<compile_context>
chip_gen: v7x
topology: tpu7x:2x2x1
jax: 0.10.0
libtpu: 0.0.40
codegen_flags: <defaults>
</compile_context>

<pallas_src>
import functools

import jax
import jax.numpy as jnp
from jax.experimental import pallas as pl
from jax.experimental.pallas import tpu as pltpu

EMB = 256      # embedding_size in the PyTorch module
LANE = 128
SUBLANE = 8


def _round_up(n, m):
    return ((n + m - 1) // m) * m


# ----------------------------------------------------------------------------
# Kernel
# ----------------------------------------------------------------------------
def net_kernel(x_ref, enc_w_ref, enc_b_ref,
               w_ih0_ref, b0_ref, w_ih1_ref, b1_ref,
               dec_w_ref, dec_b_ref, out_ref):
    f32 = jnp.float32
    bf16 = jnp.bfloat16

    # ---- encode: Linear + (Dropout = identity in eval) + ReLU ---------------
    em = jnp.dot(x_ref[...].astype(bf16), enc_w_ref[...],
                 preferred_element_type=f32)
    em = jnp.maximum(em + enc_b_ref[...], 0.0)

    # ---- LSTM layers (single step, zero initial state) ----------------------
    # Gates are packed [i, o, g]; the forget gate is dropped (f * c0 == 0) and
    # W_hh is never loaded (h_{t-1} == 0).
    def lstm_layer(h_in, w_ref, b_ref):
        g = jnp.dot(h_in.astype(bf16), w_ref[...],
                    preferred_element_type=f32) + b_ref[...]
        io = jax.nn.sigmoid(g[:, :2 * EMB])       # one EUP pass: i and o gates
        gg = jnp.tanh(g[:, 2 * EMB:])             # cell candidate
        i_g = io[:, 0 * EMB:1 * EMB]
        o_g = io[:, 1 * EMB:2 * EMB]
        return o_g * jnp.tanh(i_g * gg)           # c_new = i*g (since f*c0 = 0)

    h1 = lstm_layer(em, w_ih0_ref, b0_ref)
    h2 = lstm_layer(h1, w_ih1_ref, b1_ref)

    # ---- decode: Linear + Sigmoid, then 2*(y - 0.5) --------------------------
    # 2*sigmoid(z) - 1 == tanh(z/2); the 1/2 is folded into dec_w / dec_b.
    logits = jnp.dot(h2.astype(bf16), dec_w_ref[...],
                     preferred_element_type=f32) + dec_b_ref[...]
    out_ref[...] = jnp.tanh(logits)


# ----------------------------------------------------------------------------
# Wrapper
# ----------------------------------------------------------------------------
@functools.partial(jax.jit, static_argnames=("tile_b",))
def _net_forward_padded(x, kp, *, tile_b):
    b_pad, onehot_pad = x.shape
    grid = (b_pad // tile_b,)

    def const_spec(a):
        # Constant block index -> weight stays VMEM-resident across batch tiles.
        return pl.BlockSpec(a.shape, lambda i: (0, 0))

    args = (x,
            kp["enc_w"], kp["enc_b"],
            kp["w_ih0"], kp["b0"],
            kp["w_ih1"], kp["b1"],
            kp["dec_w"], kp["dec_b"])

    in_specs = [pl.BlockSpec((tile_b, onehot_pad), lambda i: (i, 0))]
    in_specs += [const_spec(a) for a in args[1:]]
    out_spec = pl.BlockSpec((tile_b, onehot_pad), lambda i: (i, 0))

    flops = 2 * b_pad * (onehot_pad * EMB + 2 * EMB * 3 * EMB + EMB * onehot_pad)
    transcendentals = b_pad * (8 * EMB + onehot_pad)
    bytes_accessed = (sum(int(a.size) * a.dtype.itemsize for a in args)
                      + b_pad * onehot_pad * 4)

    # TODO(synk): on v7x, single-buffering the resident weight BlockSpecs
    # (pipeline_mode=pl.Buffered(1)) would halve their VMEM charge; left at the
    # default here since the ~0.5 MiB bf16 footprint is far below any limit.
    return pl.pallas_call(
        net_kernel,
        out_shape=jax.ShapeDtypeStruct((b_pad, onehot_pad), jnp.float32),
        grid=grid,
        in_specs=in_specs,
        out_specs=out_spec,
        compiler_params=pltpu.CompilerParams(
            dimension_semantics=("parallel",)),
        cost_estimate=pl.CostEstimate(
            flops=flops,
            transcendentals=transcendentals,
            bytes_accessed=bytes_accessed),
    )(*args)


def _choose_tile_b(B):
    """Batch tile: big enough to amortize per-step overhead, and >= 2 tiles
    whenever B >= 256 so both v7x TensorCores get work."""
    if B >= 1024:
        return 512
    if B >= 512:
        return 256
    if B >= 256:
        return 128
    return _round_up(B, SUBLANE)


def net_forward(x, kparams):
    """x: (B, onehot) float32; kparams: output of prepare_kernel_params."""
    B, onehot = x.shape
    onehot_pad = kparams["dec_b"].shape[1]

    tile_b = _choose_tile_b(B)
    b_pad = _round_up(B, tile_b)

    if b_pad == B and onehot_pad == onehot:
        # Already aligned: no padding copy, no output slice.
        return _net_forward_padded(x, kparams, tile_b=tile_b)

    x_pad = jnp.zeros((b_pad, onehot_pad), x.dtype).at[:B, :onehot].set(x)
    out = _net_forward_padded(x_pad, kparams, tile_b=tile_b)
    return out[:B, :onehot]


# ----------------------------------------------------------------------------
# Parameters
# ----------------------------------------------------------------------------
def init_pytorch_params(key, onehot):
    """PyTorch-equivalent parameters, pre-transposed for x @ W.

    PyTorch shapes (transposed here):
      encode.0.weight (256, onehot), bias (256,)
      lstm weight_ih_l{0,1} (1024, 256), weight_hh_l{0,1} (1024, 256),
           bias_ih_l{0,1} (1024,), bias_hh_l{0,1} (1024,)
      decode.0.weight (onehot, 256), bias (onehot,)
    Gate order: i, f, g, o.
    """
    ks = jax.random.split(key, 12)
    s = 0.05

    def rnd(k, shape):
        return s * jax.random.normal(k, shape, jnp.float32)

    return {
        "enc_w": rnd(ks[0], (onehot, EMB)), "enc_b": rnd(ks[1], (EMB,)),
        "w_ih0": rnd(ks[2], (EMB, 4 * EMB)), "w_hh0": rnd(ks[3], (EMB, 4 * EMB)),
        "b_ih0": rnd(ks[4], (4 * EMB,)), "b_hh0": rnd(ks[5], (4 * EMB,)),
        "w_ih1": rnd(ks[6], (EMB, 4 * EMB)), "w_hh1": rnd(ks[7], (EMB, 4 * EMB)),
        "b_ih1": rnd(ks[8], (4 * EMB,)), "b_hh1": rnd(ks[9], (4 * EMB,)),
        "dec_w": rnd(ks[10], (EMB, onehot)), "dec_b": rnd(ks[11], (onehot,)),
    }


def _repack_iog(w):
    """[i, f, g, o] -> [i, o, g] along the last axis (forget gate dropped)."""
    return jnp.concatenate(
        [w[..., 0 * EMB:1 * EMB], w[..., 3 * EMB:4 * EMB], w[..., 2 * EMB:3 * EMB]],
        axis=-1)


def prepare_kernel_params(pt, onehot):
    """Kernel-side parameter packing:
      * drop forget-gate columns and repack [i, f, g, o] -> [i, o, g]
        (exact: c0 == 0; contiguous sigmoid / tanh slices in the kernel)
      * drop W_hh entirely (exact: h0 == 0)
      * fold b_ih + b_hh into one bias per layer
      * pre-scale decode weight/bias by 0.5 (2*sigmoid(z)-1 == tanh(z/2))
      * cast weight matrices to bf16 (biases stay f32)
      * pad the onehot dimension to a multiple of 128 (lane-dense I/O)
    """
    onehot_pad = max(_round_up(onehot, LANE), LANE)

    enc_w = jnp.zeros((onehot_pad, EMB), jnp.float32).at[:onehot].set(pt["enc_w"])
    dec_w = jnp.zeros((EMB, onehot_pad), jnp.float32).at[:, :onehot].set(
        0.5 * pt["dec_w"])
    dec_b = jnp.zeros((1, onehot_pad), jnp.float32).at[0, :onehot].set(
        0.5 * pt["dec_b"])

    return {
        "enc_w": enc_w.astype(jnp.bfloat16),
        "enc_b": pt["enc_b"].reshape(1, EMB),
        "w_ih0": _repack_iog(pt["w_ih0"]).astype(jnp.bfloat16),
        "b0": _repack_iog((pt["b_ih0"] + pt["b_hh0"]).reshape(1, -1)),
        "w_ih1": _repack_iog(pt["w_ih1"]).astype(jnp.bfloat16),
        "b1": _repack_iog((pt["b_ih1"] + pt["b_hh1"]).reshape(1, -1)),
        "dec_w": dec_w.astype(jnp.bfloat16),
        "dec_b": dec_b,
    }


# ----------------------------------------------------------------------------
# Pure-JAX references
# ----------------------------------------------------------------------------
def reference_forward(x, pt):
    """Full-precision PyTorch-equivalent math (eval mode)."""
    B = x.shape[0]
    em = jnp.maximum(x @ pt["enc_w"] + pt["enc_b"], 0.0)
    h0 = jnp.zeros((B, EMB), jnp.float32)
    c0 = jnp.zeros((B, EMB), jnp.float32)

    def lstm(inp, h, c, w_ih, w_hh, b_ih, b_hh):
        g = inp @ w_ih + h @ w_hh + b_ih + b_hh
        i = jax.nn.sigmoid(g[:, 0 * EMB:1 * EMB])
        f = jax.nn.sigmoid(g[:, 1 * EMB:2 * EMB])
        gg = jnp.tanh(g[:, 2 * EMB:3 * EMB])
        o = jax.nn.sigmoid(g[:, 3 * EMB:4 * EMB])
        c_new = f * c + i * gg
        return o * jnp.tanh(c_new)

    h1 = lstm(em, h0, c0, pt["w_ih0"], pt["w_hh0"], pt["b_ih0"], pt["b_hh0"])
    h2 = lstm(h1, h0, c0, pt["w_ih1"], pt["w_hh1"], pt["b_ih1"], pt["b_hh1"])
    return 2.0 * (jax.nn.sigmoid(h2 @ pt["dec_w"] + pt["dec_b"]) - 0.5)


def kernel_equiv_forward(x, kp, onehot):
    """Mimics the kernel's exact numerics (bf16 weights + bf16 matmul inputs,
    f32 accumulation / elementwise, tanh epilogue) in plain JAX."""
    f32, bf16 = jnp.float32, jnp.bfloat16
    onehot_pad = kp["dec_b"].shape[1]
    xp = jnp.zeros((x.shape[0], onehot_pad), f32).at[:, :onehot].set(x)

    em = jnp.dot(xp.astype(bf16), kp["enc_w"], preferred_element_type=f32)
    em = jnp.maximum(em + kp["enc_b"], 0.0)

    def layer(h, w, b):
        g = jnp.dot(h.astype(bf16), w, preferred_element_type=f32) + b
        io = jax.nn.sigmoid(g[:, :2 * EMB])
        gg = jnp.tanh(g[:, 2 * EMB:])
        return io[:, EMB:2 * EMB] * jnp.tanh(io[:, :EMB] * gg)

    h1 = layer(em, kp["w_ih0"], kp["b0"])
    h2 = layer(h1, kp["w_ih1"], kp["b1"])
    out = jnp.tanh(jnp.dot(h2.astype(bf16), kp["dec_w"],
                           preferred_element_type=f32) + kp["dec_b"])
    return out[:, :onehot]


# ----------------------------------------------------------------------------
# Main
# ----------------------------------------------------------------------------
if __name__ == "__main__":
    key = jax.random.PRNGKey(0)
    kx, kparam = jax.random.split(key)

    B = 8          # batch
    ONEHOT = 128   # onehot_num (lane-aligned; other sizes are padded internally)

    x = jax.random.uniform(kx, (B, ONEHOT), jnp.float32)
    pt_params = init_pytorch_params(kparam, ONEHOT)
    kernel_params = prepare_kernel_params(pt_params, ONEHOT)

    out = jax.block_until_ready(net_forward(x, kernel_params))
    assert out.shape == (B, ONEHOT)

    # (1) Strict check vs a pure-JAX model of the kernel's exact numerics.
    ref_q = kernel_equiv_forward(x, kernel_params, ONEHOT)
    assert jnp.allclose(out, ref_q, atol=2e-3, rtol=0.0), \
        "mismatch vs kernel-equivalent (bf16) reference"

    # (2) Sanity check vs the full-f32 PyTorch-equivalent reference
    #     (tolerance accounts for bf16 weight + activation quantization).
    ref = reference_forward(x, pt_params)
    assert jnp.allclose(out, ref, atol=5e-2, rtol=0.0), \
        "mismatch vs f32 reference"

    print("KERNEL_OK")
</pallas_src>

<mosaic_0001>
module attributes {stable_mosaic.version = 11 : i64} {
  func.func @net_kernel(%arg0: i32, %arg1: memref<8x128xf32, #tpu.memory_space<vmem>>, %arg2: memref<128x256xbf16, #tpu.memory_space<vmem>>, %arg3: memref<1x256xf32, #tpu.memory_space<vmem>>, %arg4: memref<256x768xbf16, #tpu.memory_space<vmem>>, %arg5: memref<1x768xf32, #tpu.memory_space<vmem>>, %arg6: memref<256x768xbf16, #tpu.memory_space<vmem>>, %arg7: memref<1x768xf32, #tpu.memory_space<vmem>>, %arg8: memref<256x128xbf16, #tpu.memory_space<vmem>>, %arg9: memref<1x128xf32, #tpu.memory_space<vmem>>, %arg10: memref<8x128xf32, #tpu.memory_space<vmem>>) attributes {dimension_semantics = [#tpu.dimension_semantics<parallel>], iteration_bounds = array<i64: 1>, scalar_prefetch = 0 : i64, scratch_operands = 0 : i64, tpu.core_type = #tpu.core_type<tc>, window_params = [{transform_indices = @transform_0, window_bounds = array<i64: 8, 128>}, {pipeline_mode = #tpu.pipeline_mode<synchronous>, transform_indices = @transform_1, window_bounds = array<i64: 128, 256>}, {pipeline_mode = #tpu.pipeline_mode<synchronous>, transform_indices = @transform_2, window_bounds = array<i64: 1, 256>}, {pipeline_mode = #tpu.pipeline_mode<synchronous>, transform_indices = @transform_3, window_bounds = array<i64: 256, 768>}, {pipeline_mode = #tpu.pipeline_mode<synchronous>, transform_indices = @transform_4, window_bounds = array<i64: 1, 768>}, {pipeline_mode = #tpu.pipeline_mode<synchronous>, transform_indices = @transform_5, window_bounds = array<i64: 256, 768>}, {pipeline_mode = #tpu.pipeline_mode<synchronous>, transform_indices = @transform_6, window_bounds = array<i64: 1, 768>}, {pipeline_mode = #tpu.pipeline_mode<synchronous>, transform_indices = @transform_7, window_bounds = array<i64: 256, 128>}, {pipeline_mode = #tpu.pipeline_mode<synchronous>, transform_indices = @transform_8, window_bounds = array<i64: 1, 128>}, {transform_indices = @transform_9, window_bounds = array<i64: 8, 128>}]} {
    %c0 = arith.constant 0 : index
    %c0_0 = arith.constant 0 : index
    %0 = vector.load %arg1[%c0, %c0_0] : memref<8x128xf32, #tpu.memory_space<vmem>>, vector<8x128xf32>
    %1 = arith.truncf %0 : vector<8x128xf32> to vector<8x128xbf16>
    %c0_1 = arith.constant 0 : index
    %c0_2 = arith.constant 0 : index
    %2 = vector.load %arg2[%c0_1, %c0_2] : memref<128x256xbf16, #tpu.memory_space<vmem>>, vector<128x256xbf16>
    %cst = arith.constant dense<0.000000e+00> : vector<8x256xf32>
    %3 = tpu.matmul %1, %2, %cst {dimension_numbers = #tpu.dot_dimension_numbers<[1], [0], [0], [1], [0, 0, 1, 1], [], []>} : vector<8x128xbf16>, vector<128x256xbf16>, vector<8x256xf32> -> vector<8x256xf32>
    %c0_3 = arith.constant 0 : index
    %c0_4 = arith.constant 0 : index
    %4 = vector.load %arg3[%c0_3, %c0_4] : memref<1x256xf32, #tpu.memory_space<vmem>>, vector<1x256xf32>
    %5 = vector.broadcast %4 : vector<1x256xf32> to vector<8x256xf32>
    %6 = arith.addf %3, %5 : vector<8x256xf32>
    %cst_5 = arith.constant 0.000000e+00 : f32
    %7 = vector.broadcast %cst_5 : f32 to vector<8x256xf32>
    %8 = arith.maximumf %6, %7 : vector<8x256xf32>
    %9 = arith.truncf %8 : vector<8x256xf32> to vector<8x256xbf16>
    %c0_6 = arith.constant 0 : index
    %c0_7 = arith.constant 0 : index
    %10 = vector.load %arg4[%c0_6, %c0_7] : memref<256x768xbf16, #tpu.memory_space<vmem>>, vector<256x768xbf16>
    %cst_8 = arith.constant dense<0.000000e+00> : vector<8x768xf32>
    %11 = tpu.matmul %9, %10, %cst_8 {dimension_numbers = #tpu.dot_dimension_numbers<[1], [0], [0], [1], [0, 0, 1, 1], [], []>} : vector<8x256xbf16>, vector<256x768xbf16>, vector<8x768xf32> -> vector<8x768xf32>
    %c0_9 = arith.constant 0 : index
    %c0_10 = arith.constant 0 : index
    %12 = vector.load %arg5[%c0_9, %c0_10] : memref<1x768xf32, #tpu.memory_space<vmem>>, vector<1x768xf32>
    %13 = vector.broadcast %12 : vector<1x768xf32> to vector<8x768xf32>
    %14 = arith.addf %11, %13 : vector<8x768xf32>
    %15 = vector.extract_strided_slice %14 {offsets = [0, 0], sizes = [8, 512], strides = [1, 1]} : vector<8x768xf32> to vector<8x512xf32>
    %16 = arith.negf %15 : vector<8x512xf32>
    %17 = math.exp %16 : vector<8x512xf32>
    %cst_11 = arith.constant 1.000000e+00 : f32
    %18 = vector.broadcast %cst_11 : f32 to vector<8x512xf32>
    %19 = arith.addf %18, %17 : vector<8x512xf32>
    %20 = arith.divf %18, %19 : vector<8x512xf32>
    %21 = vector.extract_strided_slice %14 {offsets = [0, 512], sizes = [8, 256], strides = [1, 1]} : vector<8x768xf32> to vector<8x256xf32>
    %22 = math.tanh %21 : vector<8x256xf32>
    %23 = vector.extract_strided_slice %20 {offsets = [0, 0], sizes = [8, 256], strides = [1, 1]} : vector<8x512xf32> to vector<8x256xf32>
    %24 = vector.extract_strided_slice %20 {offsets = [0, 256], sizes = [8, 256], strides = [1, 1]} : vector<8x512xf32> to vector<8x256xf32>
    %25 = arith.mulf %23, %22 : vector<8x256xf32>
    %26 = math.tanh %25 : vector<8x256xf32>
    %27 = arith.mulf %24, %26 : vector<8x256xf32>
    %28 = arith.truncf %27 : vector<8x256xf32> to vector<8x256xbf16>
    %c0_12 = arith.constant 0 : index
    %c0_13 = arith.constant 0 : index
    %29 = vector.load %arg6[%c0_12, %c0_13] : memref<256x768xbf16, #tpu.memory_space<vmem>>, vector<256x768xbf16>
    %cst_14 = arith.constant dense<0.000000e+00> : vector<8x768xf32>
    %30 = tpu.matmul %28, %29, %cst_14 {dimension_numbers = #tpu.dot_dimension_numbers<[1], [0], [0], [1], [0, 0, 1, 1], [], []>} : vector<8x256xbf16>, vector<256x768xbf16>, vector<8x768xf32> -> vector<8x768xf32>
    %c0_15 = arith.constant 0 : index
    %c0_16 = arith.constant 0 : index
    %31 = vector.load %arg7[%c0_15, %c0_16] : memref<1x768xf32, #tpu.memory_space<vmem>>, vector<1x768xf32>
    %32 = vector.broadcast %31 : vector<1x768xf32> to vector<8x768xf32>
    %33 = arith.addf %30, %32 : vector<8x768xf32>
    %34 = vector.extract_strided_slice %33 {offsets = [0, 0], sizes = [8, 512], strides = [1, 1]} : vector<8x768xf32> to vector<8x512xf32>
    %35 = arith.negf %34 : vector<8x512xf32>
    %36 = math.exp %35 : vector<8x512xf32>
    %cst_17 = arith.constant 1.000000e+00 : f32
    %37 = vector.broadcast %cst_17 : f32 to vector<8x512xf32>
    %38 = arith.addf %37, %36 : vector<8x512xf32>
    %39 = arith.divf %37, %38 : vector<8x512xf32>
    %40 = vector.extract_strided_slice %33 {offsets = [0, 512], sizes = [8, 256], strides = [1, 1]} : vector<8x768xf32> to vector<8x256xf32>
    %41 = math.tanh %40 : vector<8x256xf32>
    %42 = vector.extract_strided_slice %39 {offsets = [0, 0], sizes = [8, 256], strides = [1, 1]} : vector<8x512xf32> to vector<8x256xf32>
    %43 = vector.extract_strided_slice %39 {offsets = [0, 256], sizes = [8, 256], strides = [1, 1]} : vector<8x512xf32> to vector<8x256xf32>
    %44 = arith.mulf %42, %41 : vector<8x256xf32>
    %45 = math.tanh %44 : vector<8x256xf32>
    %46 = arith.mulf %43, %45 : vector<8x256xf32>
    %47 = arith.truncf %46 : vector<8x256xf32> to vector<8x256xbf16>
    %c0_18 = arith.constant 0 : index
    %c0_19 = arith.constant 0 : index
    %48 = vector.load %arg8[%c0_18, %c0_19] : memref<256x128xbf16, #tpu.memory_space<vmem>>, vector<256x128xbf16>
    %cst_20 = arith.constant dense<0.000000e+00> : vector<8x128xf32>
    %49 = tpu.matmul %47, %48, %cst_20 {dimension_numbers = #tpu.dot_dimension_numbers<[1], [0], [0], [1], [0, 0, 1, 1], [], []>} : vector<8x256xbf16>, vector<256x128xbf16>, vector<8x128xf32> -> vector<8x128xf32>
    %c0_21 = arith.constant 0 : index
    %c0_22 = arith.constant 0 : index
    %50 = vector.load %arg9[%c0_21, %c0_22] : memref<1x128xf32, #tpu.memory_space<vmem>>, vector<1x128xf32>
    %51 = vector.broadcast %50 : vector<1x128xf32> to vector<8x128xf32>
    %52 = arith.addf %49, %51 : vector<8x128xf32>
    %53 = math.tanh %52 : vector<8x128xf32>
    %c0_23 = arith.constant 0 : index
    %c0_24 = arith.constant 0 : index
    %54 = vector.load %arg10[%c0_23, %c0_24] : memref<8x128xf32, #tpu.memory_space<vmem>>, vector<8x128xf32>
    tpu.vector_store %arg10[%c0_23, %c0_24], %53 {strides = array<i32>} : memref<8x128xf32, #tpu.memory_space<vmem>>, vector<8x128xf32>,
    return
  }
  func.func @transform_0(%arg0: i32) -> (i32, i32) {
    %c0_i32 = arith.constant 0 : i32
    %c0_i32_0 = arith.constant 0 : i32
    return %arg0, %c0_i32 : i32, i32
  }
  func.func @transform_1(%arg0: i32) -> (i32, i32) {
    %c0_i32 = arith.constant 0 : i32
    %c0_i32_0 = arith.constant 0 : i32
    %c0_i32_1 = arith.constant 0 : i32
    return %c0_i32, %c0_i32_0 : i32, i32
  }
  func.func @transform_2(%arg0: i32) -> (i32, i32) {
    %c0_i32 = arith.constant 0 : i32
    %c0_i32_0 = arith.constant 0 : i32
    %c0_i32_1 = arith.constant 0 : i32
    return %c0_i32, %c0_i32_0 : i32, i32
  }
  func.func @transform_3(%arg0: i32) -> (i32, i32) {
    %c0_i32 = arith.constant 0 : i32
    %c0_i32_0 = arith.constant 0 : i32
    %c0_i32_1 = arith.constant 0 : i32
    return %c0_i32, %c0_i32_0 : i32, i32
  }
  func.func @transform_4(%arg0: i32) -> (i32, i32) {
    %c0_i32 = arith.constant 0 : i32
    %c0_i32_0 = arith.constant 0 : i32
    %c0_i32_1 = arith.constant 0 : i32
    return %c0_i32, %c0_i32_0 : i32, i32
  }
  func.func @transform_5(%arg0: i32) -> (i32, i32) {
    %c0_i32 = arith.constant 0 : i32
    %c0_i32_0 = arith.constant 0 : i32
    %c0_i32_1 = arith.constant 0 : i32
    return %c0_i32, %c0_i32_0 : i32, i32
  }
  func.func @transform_6(%arg0: i32) -> (i32, i32) {
    %c0_i32 = arith.constant 0 : i32
    %c0_i32_0 = arith.constant 0 : i32
    %c0_i32_1 = arith.constant 0 : i32
    return %c0_i32, %c0_i32_0 : i32, i32
  }
  func.func @transform_7(%arg0: i32) -> (i32, i32) {
    %c0_i32 = arith.constant 0 : i32
    %c0_i32_0 = arith.constant 0 : i32
    %c0_i32_1 = arith.constant 0 : i32
    return %c0_i32, %c0_i32_0 : i32, i32
  }
  func.func @transform_8(%arg0: i32) -> (i32, i32) {
    %c0_i32 = arith.constant 0 : i32
    %c0_i32_0 = arith.constant 0 : i32
    %c0_i32_1 = arith.constant 0 : i32
    return %c0_i32, %c0_i32_0 : i32, i32
  }
  func.func @transform_9(%arg0: i32) -> (i32, i32) {
    %c0_i32 = arith.constant 0 : i32
    %c0_i32_0 = arith.constant 0 : i32
    return %arg0, %c0_i32 : i32, i32
  }
}

</mosaic_0001>

<llo_original>
// kernel: _net_forward_padded.1
$region0: #{_net_forward_padded.1}
  #allocation0 [shape = 'u32[]', space=smem, size = 0x4, offset = 0x4, fixed_abs, tag = 'smem constant byte address 0x4 - core index']
  #allocation1 [shape = 'u32[144,128]{1,0:T(1,128)}', space=vmem, size = 0x12000, scoped, tag = 'internal scratch']
  %s0 = inlined_call_operand.hbm [shape: f32[8,128], index: 0, kind: input, shape index: {}]
  %s1 = inlined_call_operand.hbm [shape: bf16[128,256], index: 1, kind: input, shape index: {}]
  %s2 = inlined_call_operand.vmem [shape: f32[1,256], index: 2, kind: input, shape index: {}]
  %s3 = inlined_call_operand.hbm [shape: bf16[256,768], index: 3, kind: input, shape index: {}]
  %s4 = inlined_call_operand.hbm [shape: f32[1,768], index: 4, kind: input, shape index: {}]
  %s5 = inlined_call_operand.hbm [shape: bf16[256,768], index: 5, kind: input, shape index: {}]
  %s6 = inlined_call_operand.vmem [shape: f32[1,768], index: 6, kind: input, shape index: {}]
  %s7 = inlined_call_operand.hbm [shape: bf16[256,128], index: 7, kind: input, shape index: {}]
  %s8 = inlined_call_operand.vmem [shape: f32[1,128], index: 8, kind: input, shape index: {}]
  %s9 = inlined_call_operand.hbm [shape: f32[8,128], index: 9, kind: output, shape index: {}]
  %s10 = sld [smem:[#allocation0]]
  $region70: #{_net_forward_padded.1} parent=0
    _
  %s12 = ssub.s32 1, %s10
  %s13 = scalar_select 0, %s12, %s10
  $region1: #{_net_forward_padded.1} parent=0
    #allocation2 [shape = 'u8[4096]{0}', space=vmem, size = 0x1000, scoped, tag = 'input window, operand 0, single buffered']
    #allocation3 [shape = 's32[1]{0}', space=sflag, size = 0x4, scoped, tag = 'scoped memory for _net_forward_padded.1']
    #allocation4 [shape = 's32[1]{0}', space=sflag, size = 0x4, scoped, tag = 'scoped memory for _net_forward_padded.1']
    #allocation5 [shape = 'u8[65536]{0}', space=vmem, size = 0x10000, scoped, tag = 'input window, operand 1, single buffered']
    #allocation6 [shape = 's32[1]{0}', space=sflag, size = 0x4, scoped, tag = 'scoped memory for _net_forward_padded.1']
    #allocation7 [shape = 'u8[393216]{0}', space=vmem, size = 0x60000, scoped, tag = 'input window, operand 3, single buffered']
    #allocation8 [shape = 'u8[3072]{0}', space=vmem, size = 0xc00, scoped, tag = 'input window, operand 4, single buffered']
    #allocation9 [shape = 's32[1]{0}', space=sflag, size = 0x4, scoped, tag = 'scoped memory for _net_forward_padded.1']
    #allocation10 [shape = 'u8[393216]{0}', space=vmem, size = 0x60000, scoped, tag = 'input window, operand 5, single buffered']
    #allocation11 [shape = 'u8[65536]{0}', space=vmem, size = 0x10000, scoped, tag = 'input window, operand 7, single buffered']
    #allocation12 [shape = 's32[1]{0}', space=sflag, size = 0x4, scoped, tag = 'scoped memory for _net_forward_padded.1']
    #allocation13 [shape = 'u8[4096]{0}', space=vmem, size = 0x1000, scoped, tag = 'output window, operand 0, single buffered']
    %14 = vsyncpa [#allocation3], 0
    %15 = vsyncpa [#allocation6], 0
    %16 = vsyncpa [#allocation9], 0
    %17 = vsyncpa [#allocation12], 0
    %18 = vsyncpa [#allocation4], 0
    // Predicated region
    $region2: #{_net_forward_padded.1} parent=1 // pred_check
      _
    $region3: #{_net_forward_padded.1} parent=1 // pred_check_branch
      %20 = sbr.rel (0) target = $region5
    $region4: #{_net_forward_padded.1} parent=1 // pred_region
      %s22 = ssub.s32 128, 128
      %23 = vsyncadd [#allocation3], %s22
      %s25 = sshll.u32 [#allocation2], 4
      %s26 = int_to_ptr.vmem [resolvable:$true] %s25
      %28 = dma.hbm_to_vmem [thread:$0]  %s0, 128, %s26, [#allocation3]
    $region5: #{_net_forward_padded.1} parent=1 // pred_fallthru
      _
    // Predicated region
    $region6: #{_net_forward_padded.1} parent=1 // pred_check
      _
    $region7: #{_net_forward_padded.1} parent=1 // pred_check_branch
      %30 = sbr.rel (0) target = $region9
    $region8: #{_net_forward_padded.1} parent=1 // pred_region
      %s32 = ssub.s32 2048, 2048
      %33 = vsyncadd [#allocation6], %s32
      %s34 = sshll.u32 [#allocation5], 4
      %s35 = int_to_ptr.vmem [resolvable:$true] %s34
      %40 = dma.hbm_to_vmem [thread:$0]  %s1, 2048, %s35, [#allocation6], 128, 128, 8
    $region9: #{_net_forward_padded.1} parent=1 // pred_fallthru
      _
    // Predicated region
    $region10: #{_net_forward_padded.1} parent=1 // pred_check
      _
    $region11: #{_net_forward_padded.1} parent=1 // pred_check_branch
      %42 = sbr.rel (0) target = $region13
    $region12: #{_net_forward_padded.1} parent=1 // pred_region
      _
    $region13: #{_net_forward_padded.1} parent=1 // pred_fallthru
      _
    // Predicated region
    $region14: #{_net_forward_padded.1} parent=1 // pred_check
      _
    $region15: #{_net_forward_padded.1} parent=1 // pred_check_branch
      %44 = sbr.rel (0) target = $region17
    $region16: #{_net_forward_padded.1} parent=1 // pred_region
      %s46 = ssub.s32 12288, 12288
      %47 = vsyncadd [#allocation6], %s46
      %s48 = sshll.u32 [#allocation7], 4
      %s49 = int_to_ptr.vmem [resolvable:$true] %s48
      %54 = dma.hbm_to_vmem [thread:$0]  %s3, 12288, %s49, [#allocation6], 384, 384, 24
    $region17: #{_net_forward_padded.1} parent=1 // pred_fallthru
      _
    // Predicated region
    $region18: #{_net_forward_padded.1} parent=1 // pred_check
      _
    $region19: #{_net_forward_padded.1} parent=1 // pred_check_branch
      %56 = sbr.rel (0) target = $region21
    $region20: #{_net_forward_padded.1} parent=1 // pred_region
      %s58 = ssub.s32 96, 96
      %59 = vsyncadd [#allocation9], %s58
      %s61 = sshll.u32 [#allocation8], 4
      %s62 = int_to_ptr.vmem [resolvable:$true] %s61
      %64 = dma.hbm_to_vmem [thread:$0]  %s4, 96, %s62, [#allocation9]
    $region21: #{_net_forward_padded.1} parent=1 // pred_fallthru
      _
    // Predicated region
    $region22: #{_net_forward_padded.1} parent=1 // pred_check
      _
    $region23: #{_net_forward_padded.1} parent=1 // pred_check_branch
      %66 = sbr.rel (0) target = $region25
    $region24: #{_net_forward_padded.1} parent=1 // pred_region
      %s68 = ssub.s32 12288, 12288
      %69 = vsyncadd [#allocation9], %s68
      %s70 = sshll.u32 [#allocation10], 4
      %s71 = int_to_ptr.vmem [resolvable:$true] %s70
      %76 = dma.hbm_to_vmem [thread:$0]  %s5, 12288, %s71, [#allocation9], 384, 384, 24
    $region25: #{_net_forward_padded.1} parent=1 // pred_fallthru
      _
    // Predicated region
    $region26: #{_net_forward_padded.1} parent=1 // pred_check
      _
    $region27: #{_net_forward_padded.1} parent=1 // pred_check_branch
      %78 = sbr.rel (0) target = $region29
    $region28: #{_net_forward_padded.1} parent=1 // pred_region
      _
    $region29: #{_net_forward_padded.1} parent=1 // pred_fallthru
      _
    // Predicated region
    $region30: #{_net_forward_padded.1} parent=1 // pred_check
      _
    $region31: #{_net_forward_padded.1} parent=1 // pred_check_branch
      %80 = sbr.rel (0) target = $region33
    $region32: #{_net_forward_padded.1} parent=1 // pred_region
      %s82 = ssub.s32 2048, 2048
      %83 = vsyncadd [#allocation12], %s82
      %s84 = sshll.u32 [#allocation11], 4
      %s85 = int_to_ptr.vmem [resolvable:$true] %s84
      %90 = dma.hbm_to_vmem [thread:$0]  %s7, 2048, %s85, [#allocation12], 64, 64, 4
    $region33: #{_net_forward_padded.1} parent=1 // pred_fallthru
      _
    // Predicated region
    $region34: #{_net_forward_padded.1} parent=1 // pred_check
      _
    $region35: #{_net_forward_padded.1} parent=1 // pred_check_branch
      %92 = sbr.rel (0) target = $region37
    $region36: #{_net_forward_padded.1} parent=1 // pred_region
      _
    $region37: #{_net_forward_padded.1} parent=1 // pred_fallthru
      _
    // Predicated region
    $region38: #{_net_forward_padded.1} parent=1 // pred_check
      _
    $region39: #{_net_forward_padded.1} parent=1 // pred_check_branch
      %94 = sbr.rel (0) target = $region41
    $region40: #{_net_forward_padded.1} parent=1 // pred_region
      %95 = dma.done [#allocation3], 128
    $region41: #{_net_forward_padded.1} parent=1 // pred_fallthru
      _
    // Predicated region
    $region42: #{_net_forward_padded.1} parent=1 // pred_check
      _
    $region43: #{_net_forward_padded.1} parent=1 // pred_check_branch
      %97 = sbr.rel (0) target = $region45
    $region44: #{_net_forward_padded.1} parent=1 // pred_region
      %98 = dma.done [#allocation6], 2048
    $region45: #{_net_forward_padded.1} parent=1 // pred_fallthru
      _
    // Predicated region
    $region46: #{_net_forward_padded.1} parent=1 // pred_check
      _
    $region47: #{_net_forward_padded.1} parent=1 // pred_check_branch
      %100 = sbr.rel (0) target = $region49
    $region48: #{_net_forward_padded.1} parent=1 // pred_region
      %101 = dma.done [#allocation6], 12288
    $region49: #{_net_forward_padded.1} parent=1 // pred_fallthru
      _
    // Predicated region
    $region50: #{_net_forward_padded.1} parent=1 // pred_check
      _
    $region51: #{_net_forward_padded.1} parent=1 // pred_check_branch
      %103 = sbr.rel (0) target = $region53
    $region52: #{_net_forward_padded.1} parent=1 // pred_region
      %104 = dma.done [#allocation9], 96
    $region53: #{_net_forward_padded.1} parent=1 // pred_fallthru
      _
    // Predicated region
    $region54: #{_net_forward_padded.1} parent=1 // pred_check
      _
    $region55: #{_net_forward_padded.1} parent=1 // pred_check_branch
      %106 = sbr.rel (0) target = $region57
    $region56: #{_net_forward_padded.1} parent=1 // pred_region
      %107 = dma.done [#allocation9], 12288
    $region57: #{_net_forward_padded.1} parent=1 // pred_fallthru
      _
    // Predicated region
    $region58: #{_net_forward_padded.1} parent=1 // pred_check
      _
    $region59: #{_net_forward_padded.1} parent=1 // pred_check_branch
      %109 = sbr.rel (0) target = $region61
    $region60: #{_net_forward_padded.1} parent=1 // pred_region
      %110 = dma.done [#allocation12], 2048
    $region61: #{_net_forward_padded.1} parent=1 // pred_fallthru
      _
    %v112 = vld [vmem:[#allocation2] sm:$0xff]
    %v113 = vpack.c.bf16 %v112, %v112
    %v114 = vld [vmem:[#allocation5] sm:$0xff]
    %v115 = vld [vmem:[#allocation5 + $0x8] sm:$0xff]
    %v116 = vld [vmem:[#allocation5 + $0x10] sm:$0xff]
    %v117 = vld [vmem:[#allocation5 + $0x18] sm:$0xff]
    %v118 = vld [vmem:[#allocation5 + $0x20] sm:$0xff]
    %v119 = vld [vmem:[#allocation5 + $0x28] sm:$0xff]
    %v120 = vld [vmem:[#allocation5 + $0x30] sm:$0xff]
    %v121 = vld [vmem:[#allocation5 + $0x38] sm:$0xff]
    %v122 = vld [vmem:[#allocation5 + $0x40] sm:$0xff]
    %v123 = vld [vmem:[#allocation5 + $0x48] sm:$0xff]
    %v124 = vld [vmem:[#allocation5 + $0x50] sm:$0xff]
    %v125 = vld [vmem:[#allocation5 + $0x58] sm:$0xff]
    %v126 = vld [vmem:[#allocation5 + $0x60] sm:$0xff]
    %v127 = vld [vmem:[#allocation5 + $0x68] sm:$0xff]
    %v128 = vld [vmem:[#allocation5 + $0x70] sm:$0xff]
    %v129 = vld [vmem:[#allocation5 + $0x78] sm:$0xff]
    %v130 = vld [vmem:[%s2] sm:$0x3]
    %v132 = vlaneseq
    %v133 = vshrl.u32 %v132, 7
    %v134 = vsub.s32 0, %v133
    %v135 = vrot.slane %v130, %v134
    %v136 = vlaneseq
    %v137 = vshrl.u32 %v136, 7
    %v138 = vsub.s32 1, %v137
    %v139 = vrot.slane %v130, %v138
    %v158 = vunpack.c.l.b16 %v114
    %v159 = vunpack.c.h.b16 %v114
    %v160 = vunpack.c.l.b16 %v115
    %v161 = vunpack.c.h.b16 %v115
    %v162 = vunpack.c.l.b16 %v116
    %v163 = vunpack.c.h.b16 %v116
    %v164 = vunpack.c.l.b16 %v117
    %v165 = vunpack.c.h.b16 %v117
    %v166 = vunpack.c.l.b16 %v118
    %v167 = vunpack.c.h.b16 %v118
    %v168 = vunpack.c.l.b16 %v119
    %v169 = vunpack.c.h.b16 %v119
    %v170 = vunpack.c.l.b16 %v120
    %v171 = vunpack.c.h.b16 %v120
    %v172 = vunpack.c.l.b16 %v121
    %v173 = vunpack.c.h.b16 %v121
    %v174 = vunpack.c.l.b16 %v122
    %v175 = vunpack.c.h.b16 %v122
    %v176 = vunpack.c.l.b16 %v123
    %v177 = vunpack.c.h.b16 %v123
    %v178 = vunpack.c.l.b16 %v124
    %v179 = vunpack.c.h.b16 %v124
    %v180 = vunpack.c.l.b16 %v125
    %v181 = vunpack.c.h.b16 %v125
    %v182 = vunpack.c.l.b16 %v126
    %v183 = vunpack.c.h.b16 %v126
    %v184 = vunpack.c.l.b16 %v127
    %v185 = vunpack.c.h.b16 %v127
    %v186 = vunpack.c.l.b16 %v128
    %v187 = vunpack.c.h.b16 %v128
    %v188 = vunpack.c.l.b16 %v129
    %v189 = vunpack.c.h.b16 %v129
    %v190 = vpack.c.b16 %v160, %v158
    %v191 = vpack.c.b16 %v161, %v159
    %v192 = vpack.c.b16 %v164, %v162
    %v193 = vpack.c.b16 %v165, %v163
    %v194 = vpack.c.b16 %v168, %v166
    %v195 = vpack.c.b16 %v169, %v167
    %v196 = vpack.c.b16 %v172, %v170
    %v197 = vpack.c.b16 %v173, %v171
    %v198 = vpack.c.b16 %v176, %v174
    %v199 = vpack.c.b16 %v177, %v175
    %v200 = vpack.c.b16 %v180, %v178
    %v201 = vpack.c.b16 %v181, %v179
    %v202 = vpack.c.b16 %v184, %v182
    %v203 = vpack.c.b16 %v185, %v183
    %v204 = vpack.c.b16 %v188, %v186
    %v205 = vpack.c.b16 %v189, %v187
    %222 = vmatprep.subr.bf16.mxu0 %v191
    %223 = vmatpush1.bf16.msra.mxu0 %v190
    %224 = vmatprep.subr.bf16.mxu0 %v193
    %225 = vmatpush1.bf16.msra.mxu0 %v192
    %226 = vmatprep.subr.bf16.mxu0 %v195
    %227 = vmatpush1.bf16.msra.mxu0 %v194
    %228 = vmatprep.subr.bf16.mxu0 %v197
    %229 = vmatpush1.bf16.msra.mxu0 %v196
    %230 = vmatprep.subr.bf16.mxu0 %v199
    %231 = vmatpush1.bf16.msra.mxu0 %v198
    %232 = vmatprep.subr.bf16.mxu0 %v201
    %233 = vmatpush1.bf16.msra.mxu0 %v200
    %234 = vmatprep.subr.bf16.mxu0 %v203
    %235 = vmatpush1.bf16.msra.mxu0 %v202
    %236 = vmatprep.subr.bf16.mxu0 %v205
    %237 = vmatpush1.bf16.msra.mxu0 %v204
    %238 = vmatprep.subr.bf16.mxu0 0
    %239 = vmatpush1.bf16.msra.mxu0 0
    %240 = vmatprep.subr.bf16.mxu0 0
    %241 = vmatpush1.bf16.msra.mxu0 0
    %242 = vmatprep.subr.bf16.mxu0 0
    %243 = vmatpush1.bf16.msra.mxu0 0
    %244 = vmatprep.subr.bf16.mxu0 0
    %245 = vmatpush1.bf16.msra.mxu0 0
    %246 = vmatprep.subr.bf16.mxu0 0
    %247 = vmatpush1.bf16.msra.mxu0 0
    %248 = vmatprep.subr.bf16.mxu0 0
    %249 = vmatpush1.bf16.msra.mxu0 0
    %250 = vmatprep.subr.bf16.mxu0 0
    %251 = vmatpush1.bf16.msra.mxu0 0
    %252 = vmatprep.subr.bf16.mxu0 0
    %253 = vmatpush1.bf16.msra.mxu0 0
    %254 = vmatprep.mubr.bf16.mxu0 0
    %255 = vmatmul.mubr.bf16.gmra.mrb[0].mxu0 %v113
    %v256 = vpop.f32.mrb[0].mxu0
    %v257 = vadd.f32 %v135, %v256
    %v258 = vpop.f32.mrb[0].mxu0
    %v259 = vadd.f32 %v139, %v258
    %v260 = vpop.f32.mrb[0].mxu0
    %v261 = vpop.f32.mrb[0].mxu0
    %262 = vdwg.mxu0
    %v263 = vmax.f32 %v257, 0.0
    %v264 = vmax.f32 %v259, 0.0
    %v265 = vpack.c.bf16 %v263, %v263
    %v266 = vpack.c.bf16 %v264, %v264
    %v267 = vld [vmem:[#allocation7] sm:$0xff]
    %v268 = vld [vmem:[#allocation7 + $0x8] sm:$0xff]
    %v269 = vld [vmem:[#allocation7 + $0x10] sm:$0xff]
    %v270 = vld [vmem:[#allocation7 + $0x18] sm:$0xff]
    %v271 = vld [vmem:[#allocation7 + $0x20] sm:$0xff]
    %v272 = vld [vmem:[#allocation7 + $0x28] sm:$0xff]
    %v273 = vld [vmem:[#allocation7 + $0x30] sm:$0xff]
    %v274 = vld [vmem:[#allocation7 + $0x38] sm:$0xff]
    %v275 = vld [vmem:[#allocation7 + $0x40] sm:$0xff]
    %v276 = vld [vmem:[#allocation7 + $0x48] sm:$0xff]
    %v277 = vld [vmem:[#allocation7 + $0x50] sm:$0xff]
    %v278 = vld [vmem:[#allocation7 + $0x58] sm:$0xff]
    %v279 = vld [vmem:[#allocation7 + $0x60] sm:$0xff]
    %v280 = vld [vmem:[#allocation7 + $0x68] sm:$0xff]
    %v281 = vld [vmem:[#allocation7 + $0x70] sm:$0xff]
    %v282 = vld [vmem:[#allocation7 + $0x78] sm:$0xff]
    %v283 = vld [vmem:[#allocation7 + $0x80] sm:$0xff]
    %v284 = vld [vmem:[#allocation7 + $0x88] sm:$0xff]
    %v285 = vld [vmem:[#allocation7 + $0x90] sm:$0xff]
    %v286 = vld [vmem:[#allocation7 + $0x98] sm:$0xff]
    %v287 = vld [vmem:[#allocation7 + $0xa0] sm:$0xff]
    %v288 = vld [vmem:[#allocation7 + $0xa8] sm:$0xff]
    %v289 = vld [vmem:[#allocation7 + $0xb0] sm:$0xff]
    %v290 = vld [vmem:[#allocation7 + $0xb8] sm:$0xff]
    %v291 = vld [vmem:[#allocation7 + $0xc0] sm:$0xff]
    %v292 = vld [vmem:[#allocation7 + $0xc8] sm:$0xff]
    %v293 = vld [vmem:[#allocation7 + $0xd0] sm:$0xff]
    %v294 = vld [vmem:[#allocation7 + $0xd8] sm:$0xff]
    %v295 = vld [vmem:[#allocation7 + $0xe0] sm:$0xff]
    %v296 = vld [vmem:[#allocation7 + $0xe8] sm:$0xff]
    %v297 = vld [vmem:[#allocation7 + $0xf0] sm:$0xff]
    %v298 = vld [vmem:[#allocation7 + $0xf8] sm:$0xff]
    %v299 = vld [vmem:[#allocation7 + $0x100] sm:$0xff]
    %v300 = vld [vmem:[#allocation7 + $0x108] sm:$0xff]
    %v301 = vld [vmem:[#allocation7 + $0x110] sm:$0xff]
    %v302 = vld [vmem:[#allocation7 + $0x118] sm:$0xff]
    %v303 = vld [vmem:[#allocation7 + $0x120] sm:$0xff]
    %v304 = vld [vmem:[#allocation7 + $0x128] sm:$0xff]
    %v305 = vld [vmem:[#allocation7 + $0x130] sm:$0xff]
    %v306 = vld [vmem:[#allocation7 + $0x138] sm:$0xff]
    %v307 = vld [vmem:[#allocation7 + $0x140] sm:$0xff]
    %v308 = vld [vmem:[#allocation7 + $0x148] sm:$0xff]
    %v309 = vld [vmem:[#allocation7 + $0x150] sm:$0xff]
    %v310 = vld [vmem:[#allocation7 + $0x158] sm:$0xff]
    %v311 = vld [vmem:[#allocation7 + $0x160] sm:$0xff]
    %v312 = vld [vmem:[#allocation7 + $0x168] sm:$0xff]
    %v313 = vld [vmem:[#allocation7 + $0x170] sm:$0xff]
    %v314 = vld [vmem:[#allocation7 + $0x178] sm:$0xff]
    %v315 = vld [vmem:[#allocation7 + $0x180] sm:$0xff]
    %v316 = vld [vmem:[#allocation7 + $0x188] sm:$0xff]
    %v317 = vld [vmem:[#allocation7 + $0x190] sm:$0xff]
    %v318 = vld [vmem:[#allocation7 + $0x198] sm:$0xff]
    %v319 = vld [vmem:[#allocation7 + $0x1a0] sm:$0xff]
    %v320 = vld [vmem:[#allocation7 + $0x1a8] sm:$0xff]
    %v321 = vld [vmem:[#allocation7 + $0x1b0] sm:$0xff]
    %v322 = vld [vmem:[#allocation7 + $0x1b8] sm:$0xff]
    %v323 = vld [vmem:[#allocation7 + $0x1c0] sm:$0xff]
    %v324 = vld [vmem:[#allocation7 + $0x1c8] sm:$0xff]
    %v325 = vld [vmem:[#allocation7 + $0x1d0] sm:$0xff]
    %v326 = vld [vmem:[#allocation7 + $0x1d8] sm:$0xff]
    %v327 = vld [vmem:[#allocation7 + $0x1e0] sm:$0xff]
    %v328 = vld [vmem:[#allocation7 + $0x1e8] sm:$0xff]
    %v329 = vld [vmem:[#allocation7 + $0x1f0] sm:$0xff]
    %v330 = vld [vmem:[#allocation7 + $0x1f8] sm:$0xff]
    %v331 = vld [vmem:[#allocation7 + $0x200] sm:$0xff]
    %v332 = vld [vmem:[#allocation7 + $0x208] sm:$0xff]
    %v333 = vld [vmem:[#allocation7 + $0x210] sm:$0xff]
    %v334 = vld [vmem:[#allocation7 + $0x218] sm:$0xff]
    %v335 = vld [vmem:[#allocation7 + $0x220] sm:$0xff]
    %v336 = vld [vmem:[#allocation7 + $0x228] sm:$0xff]
    %v337 = vld [vmem:[#allocation7 + $0x230] sm:$0xff]
    %v338 = vld [vmem:[#allocation7 + $0x238] sm:$0xff]
    %v339 = vld [vmem:[#allocation7 + $0x240] sm:$0xff]
    %v340 = vld [vmem:[#allocation7 + $0x248] sm:$0xff]
    %v341 = vld [vmem:[#allocation7 + $0x250] sm:$0xff]
    %v342 = vld [vmem:[#allocation7 + $0x258] sm:$0xff]
    %v343 = vld [vmem:[#allocation7 + $0x260] sm:$0xff]
    %v344 = vld [vmem:[#allocation7 + $0x268] sm:$0xff]
    %v345 = vld [vmem:[#allocation7 + $0x270] sm:$0xff]
    %v346 = vld [vmem:[#allocation7 + $0x278] sm:$0xff]
    %v347 = vld [vmem:[#allocation7 + $0x280] sm:$0xff]
    %v348 = vld [vmem:[#allocation7 + $0x288] sm:$0xff]
    %v349 = vld [vmem:[#allocation7 + $0x290] sm:$0xff]
    %v350 = vld [vmem:[#allocation7 + $0x298] sm:$0xff]
    %v351 = vld [vmem:[#allocation7 + $0x2a0] sm:$0xff]
    %v352 = vld [vmem:[#allocation7 + $0x2a8] sm:$0xff]
    %v353 = vld [vmem:[#allocation7 + $0x2b0] sm:$0xff]
    %v354 = vld [vmem:[#allocation7 + $0x2b8] sm:$0xff]
    %v355 = vld [vmem:[#allocation7 + $0x2c0] sm:$0xff]
    %v356 = vld [vmem:[#allocation7 + $0x2c8] sm:$0xff]
    %v357 = vld [vmem:[#allocation7 + $0x2d0] sm:$0xff]
    %v358 = vld [vmem:[#allocation7 + $0x2d8] sm:$0xff]
    %v359 = vld [vmem:[#allocation7 + $0x2e0] sm:$0xff]
    %v360 = vld [vmem:[#allocation7 + $0x2e8] sm:$0xff]
    %v361 = vld [vmem:[#allocation7 + $0x2f0] sm:$0xff]
    %v362 = vld [vmem:[#allocation7 + $0x2f8] sm:$0xff]
    %v363 = vld [vmem:[#allocation8] sm:$0x3f]
    %v365 = vlaneseq
    %v366 = vshrl.u32 %v365, 7
    %v367 = vsub.s32 0, %v366
    %v368 = vrot.slane %v363, %v367
    %v369 = vlaneseq
    %v370 = vshrl.u32 %v369, 7
    %v371 = vsub.s32 1, %v370
    %v372 = vrot.slane %v363, %v371
    %v373 = vlaneseq
    %v374 = vshrl.u32 %v373, 7
    %v375 = vsub.s32 2, %v374
    %v376 = vrot.slane %v363, %v375
    %v377 = vlaneseq
    %v378 = vshrl.u32 %v377, 7
    %v379 = vsub.s32 3, %v378
    %v380 = vrot.slane %v363, %v379
    %v381 = vlaneseq
    %v382 = vshrl.u32 %v381, 7
    %v383 = vsub.s32 4, %v382
    %v384 = vrot.slane %v363, %v383
    %v385 = vlaneseq
    %v386 = vshrl.u32 %v385, 7
    %v387 = vsub.s32 5, %v386
    %v388 = vrot.slane %v363, %v387
    %v491 = vunpack.c.l.b16 %v267
    %v492 = vunpack.c.h.b16 %v267
    %v493 = vunpack.c.l.b16 %v268
    %v494 = vunpack.c.h.b16 %v268
    %v495 = vunpack.c.l.b16 %v269
    %v496 = vunpack.c.h.b16 %v269
    %v497 = vunpack.c.l.b16 %v270
    %v498 = vunpack.c.h.b16 %v270
    %v499 = vunpack.c.l.b16 %v271
    %v500 = vunpack.c.h.b16 %v271
    %v501 = vunpack.c.l.b16 %v272
    %v502 = vunpack.c.h.b16 %v272
    %v503 = vunpack.c.l.b16 %v273
    %v504 = vunpack.c.h.b16 %v273
    %v505 = vunpack.c.l.b16 %v274
    %v506 = vunpack.c.h.b16 %v274
    %v507 = vunpack.c.l.b16 %v275
    %v508 = vunpack.c.h.b16 %v275
    %v509 = vunpack.c.l.b16 %v276
    %v510 = vunpack.c.h.b16 %v276
    %v511 = vunpack.c.l.b16 %v277
    %v512 = vunpack.c.h.b16 %v277
    %v513 = vunpack.c.l.b16 %v278
    %v514 = vunpack.c.h.b16 %v278
    %v515 = vunpack.c.l.b16 %v279
    %v516 = vunpack.c.h.b16 %v279
    %v517 = vunpack.c.l.b16 %v280
    %v518 = vunpack.c.h.b16 %v280
    %v519 = vunpack.c.l.b16 %v281
    %v520 = vunpack.c.h.b16 %v281
    %v521 = vunpack.c.l.b16 %v282
    %v522 = vunpack.c.h.b16 %v282
    %v523 = vunpack.c.l.b16 %v283
    %v524 = vunpack.c.h.b16 %v283
    %v525 = vunpack.c.l.b16 %v284
    %v526 = vunpack.c.h.b16 %v284
    %v527 = vunpack.c.l.b16 %v285
    %v528 = vunpack.c.h.b16 %v285
    %v529 = vunpack.c.l.b16 %v286
    %v530 = vunpack.c.h.b16 %v286
    %v531 = vunpack.c.l.b16 %v287
    %v532 = vunpack.c.h.b16 %v287
    %v533 = vunpack.c.l.b16 %v288
    %v534 = vunpack.c.h.b16 %v288
    %v535 = vunpack.c.l.b16 %v289
    %v536 = vunpack.c.h.b16 %v289
    %v537 = vunpack.c.l.b16 %v290
    %v538 = vunpack.c.h.b16 %v290
    %v539 = vunpack.c.l.b16 %v291
    %v540 = vunpack.c.h.b16 %v291
    %v541 = vunpack.c.l.b16 %v292
    %v542 = vunpack.c.h.b16 %v292
    %v543 = vunpack.c.l.b16 %v293
    %v544 = vunpack.c.h.b16 %v293
    %v545 = vunpack.c.l.b16 %v294
    %v546 = vunpack.c.h.b16 %v294
    %v547 = vunpack.c.l.b16 %v295
    %v548 = vunpack.c.h.b16 %v295
    %v549 = vunpack.c.l.b16 %v296
    %v550 = vunpack.c.h.b16 %v296
    %v551 = vunpack.c.l.b16 %v297
    %v552 = vunpack.c.h.b16 %v297
    %v553 = vunpack.c.l.b16 %v298
    %v554 = vunpack.c.h.b16 %v298
    %v555 = vunpack.c.l.b16 %v299
    %v556 = vunpack.c.h.b16 %v299
    %v557 = vunpack.c.l.b16 %v300
    %v558 = vunpack.c.h.b16 %v300
    %v559 = vunpack.c.l.b16 %v301
    %v560 = vunpack.c.h.b16 %v301
    %v561 = vunpack.c.l.b16 %v302
    %v562 = vunpack.c.h.b16 %v302
    %v563 = vunpack.c.l.b16 %v303
    %v564 = vunpack.c.h.b16 %v303
    %v565 = vunpack.c.l.b16 %v304
    %v566 = vunpack.c.h.b16 %v304
    %v567 = vunpack.c.l.b16 %v305
    %v568 = vunpack.c.h.b16 %v305
    %v569 = vunpack.c.l.b16 %v306
    %v570 = vunpack.c.h.b16 %v306
    %v571 = vunpack.c.l.b16 %v307
    %v572 = vunpack.c.h.b16 %v307
    %v573 = vunpack.c.l.b16 %v308
    %v574 = vunpack.c.h.b16 %v308
    %v575 = vunpack.c.l.b16 %v309
    %v576 = vunpack.c.h.b16 %v309
    %v577 = vunpack.c.l.b16 %v310
    %v578 = vunpack.c.h.b16 %v310
    %v579 = vunpack.c.l.b16 %v311
    %v580 = vunpack.c.h.b16 %v311
    %v581 = vunpack.c.l.b16 %v312
    %v582 = vunpack.c.h.b16 %v312
    %v583 = vunpack.c.l.b16 %v313
    %v584 = vunpack.c.h.b16 %v313
    %v585 = vunpack.c.l.b16 %v314
    %v586 = vunpack.c.h.b16 %v314
    %v587 = vunpack.c.l.b16 %v315
    %v588 = vunpack.c.h.b16 %v315
    %v589 = vunpack.c.l.b16 %v316
    %v590 = vunpack.c.h.b16 %v316
    %v591 = vunpack.c.l.b16 %v317
    %v592 = vunpack.c.h.b16 %v317
    %v593 = vunpack.c.l.b16 %v318
    %v594 = vunpack.c.h.b16 %v318
    %v595 = vunpack.c.l.b16 %v319
    %v596 = vunpack.c.h.b16 %v319
    %v597 = vunpack.c.l.b16 %v320
    %v598 = vunpack.c.h.b16 %v320
    %v599 = vunpack.c.l.b16 %v321
    %v600 = vunpack.c.h.b16 %v321
    %v601 = vunpack.c.l.b16 %v322
    %v602 = vunpack.c.h.b16 %v322
    %v603 = vunpack.c.l.b16 %v323
    %v604 = vunpack.c.h.b16 %v323
    %v605 = vunpack.c.l.b16 %v324
    %v606 = vunpack.c.h.b16 %v324
    %v607 = vunpack.c.l.b16 %v325
    %v608 = vunpack.c.h.b16 %v325
    %v609 = vunpack.c.l.b16 %v326
    %v610 = vunpack.c.h.b16 %v326
    %v611 = vunpack.c.l.b16 %v327
    %v612 = vunpack.c.h.b16 %v327
    %v613 = vunpack.c.l.b16 %v328
    %v614 = vunpack.c.h.b16 %v328
    %v615 = vunpack.c.l.b16 %v329
    %v616 = vunpack.c.h.b16 %v329
    %v617 = vunpack.c.l.b16 %v330
    %v618 = vunpack.c.h.b16 %v330
    %v619 = vunpack.c.l.b16 %v331
    %v620 = vunpack.c.h.b16 %v331
    %v621 = vunpack.c.l.b16 %v332
    %v622 = vunpack.c.h.b16 %v332
    %v623 = vunpack.c.l.b16 %v333
    %v624 = vunpack.c.h.b16 %v333
    %v625 = vunpack.c.l.b16 %v334
    %v626 = vunpack.c.h.b16 %v334
    %v627 = vunpack.c.l.b16 %v335
    %v628 = vunpack.c.h.b16 %v335
    %v629 = vunpack.c.l.b16 %v336
    %v630 = vunpack.c.h.b16 %v336
    %v631 = vunpack.c.l.b16 %v337
    %v632 = vunpack.c.h.b16 %v337
    %v633 = vunpack.c.l.b16 %v338
    %v634 = vunpack.c.h.b16 %v338
    %v635 = vunpack.c.l.b16 %v339
    %v636 = vunpack.c.h.b16 %v339
    %v637 = vunpack.c.l.b16 %v340
    %v638 = vunpack.c.h.b16 %v340
    %v639 = vunpack.c.l.b16 %v341
    %v640 = vunpack.c.h.b16 %v341
    %v641 = vunpack.c.l.b16 %v342
    %v642 = vunpack.c.h.b16 %v342
    %v643 = vunpack.c.l.b16 %v343
    %v644 = vunpack.c.h.b16 %v343
    %v645 = vunpack.c.l.b16 %v344
    %v646 = vunpack.c.h.b16 %v344
    %v647 = vunpack.c.l.b16 %v345
    %v648 = vunpack.c.h.b16 %v345
    %v649 = vunpack.c.l.b16 %v346
    %v650 = vunpack.c.h.b16 %v346
    %v651 = vunpack.c.l.b16 %v347
    %v652 = vunpack.c.h.b16 %v347
    %v653 = vunpack.c.l.b16 %v348
    %v654 = vunpack.c.h.b16 %v348
    %v655 = vunpack.c.l.b16 %v349
    %v656 = vunpack.c.h.b16 %v349
    %v657 = vunpack.c.l.b16 %v350
    %v658 = vunpack.c.h.b16 %v350
    %v659 = vunpack.c.l.b16 %v351
    %v660 = vunpack.c.h.b16 %v351
    %v661 = vunpack.c.l.b16 %v352
    %v662 = vunpack.c.h.b16 %v352
    %v663 = vunpack.c.l.b16 %v353
    %v664 = vunpack.c.h.b16 %v353
    %v665 = vunpack.c.l.b16 %v354
    %v666 = vunpack.c.h.b16 %v354
    %v667 = vunpack.c.l.b16 %v355
    %v668 = vunpack.c.h.b16 %v355
    %v669 = vunpack.c.l.b16 %v356
    %v670 = vunpack.c.h.b16 %v356
    %v671 = vunpack.c.l.b16 %v357
    %v672 = vunpack.c.h.b16 %v357
    %v673 = vunpack.c.l.b16 %v358
    %v674 = vunpack.c.h.b16 %v358
    %v675 = vunpack.c.l.b16 %v359
    %v676 = vunpack.c.h.b16 %v359
    %v677 = vunpack.c.l.b16 %v360
    %v678 = vunpack.c.h.b16 %v360
    %v679 = vunpack.c.l.b16 %v361
    %v680 = vunpack.c.h.b16 %v361
    %v681 = vunpack.c.l.b16 %v362
    %v682 = vunpack.c.h.b16 %v362
    %v683 = vpack.c.b16 %v497, %v491
    %v684 = vpack.c.b16 %v498, %v492
    %v685 = vpack.c.b16 %v499, %v493
    %v686 = vpack.c.b16 %v500, %v494
    %v687 = vpack.c.b16 %v501, %v495
    %v688 = vpack.c.b16 %v502, %v496
    %v689 = vpack.c.b16 %v509, %v503
    %v690 = vpack.c.b16 %v510, %v504
    %v691 = vpack.c.b16 %v511, %v505
    %v692 = vpack.c.b16 %v512, %v506
    %v693 = vpack.c.b16 %v513, %v507
    %v694 = vpack.c.b16 %v514, %v508
    %v695 = vpack.c.b16 %v521, %v515
    %v696 = vpack.c.b16 %v522, %v516
    %v697 = vpack.c.b16 %v523, %v517
    %v698 = vpack.c.b16 %v524, %v518
    %v699 = vpack.c.b16 %v525, %v519
    %v700 = vpack.c.b16 %v526, %v520
    %v701 = vpack.c.b16 %v533, %v527
    %v702 = vpack.c.b16 %v534, %v528
    %v703 = vpack.c.b16 %v535, %v529
    %v704 = vpack.c.b16 %v536, %v530
    %v705 = vpack.c.b16 %v537, %v531
    %v706 = vpack.c.b16 %v538, %v532
    %v707 = vpack.c.b16 %v545, %v539
    %v708 = vpack.c.b16 %v546, %v540
    %v709 = vpack.c.b16 %v547, %v541
    %v710 = vpack.c.b16 %v548, %v542
    %v711 = vpack.c.b16 %v549, %v543
    %v712 = vpack.c.b16 %v550, %v544
    %v713 = vpack.c.b16 %v557, %v551
    %v714 = vpack.c.b16 %v558, %v552
    %v715 = vpack.c.b16 %v559, %v553
    %v716 = vpack.c.b16 %v560, %v554
    %v717 = vpack.c.b16 %v561, %v555
    %v718 = vpack.c.b16 %v562, %v556
    %v719 = vpack.c.b16 %v569, %v563
    %v720 = vpack.c.b16 %v570, %v564
    %v721 = vpack.c.b16 %v571, %v565
    %v722 = vpack.c.b16 %v572, %v566
    %v723 = vpack.c.b16 %v573, %v567
    %v724 = vpack.c.b16 %v574, %v568
    %v725 = vpack.c.b16 %v581, %v575
    %v726 = vpack.c.b16 %v582, %v576
    %v727 = vpack.c.b16 %v583, %v577
    %v728 = vpack.c.b16 %v584, %v578
    %v729 = vpack.c.b16 %v585, %v579
    %v730 = vpack.c.b16 %v586, %v580
    %v731 = vpack.c.b16 %v593, %v587
    %v732 = vpack.c.b16 %v594, %v588
    %v733 = vpack.c.b16 %v595, %v589
    %v734 = vpack.c.b16 %v596, %v590
    %v735 = vpack.c.b16 %v597, %v591
    %v736 = vpack.c.b16 %v598, %v592
    %v737 = vpack.c.b16 %v605, %v599
    %v738 = vpack.c.b16 %v606, %v600
    %v739 = vpack.c.b16 %v607, %v601
    %v740 = vpack.c.b16 %v608, %v602
    %v741 = vpack.c.b16 %v609, %v603
    %v742 = vpack.c.b16 %v610, %v604
    %v743 = vpack.c.b16 %v617, %v611
    %v744 = vpack.c.b16 %v618, %v612
    %v745 = vpack.c.b16 %v619, %v613
    %v746 = vpack.c.b16 %v620, %v614
    %v747 = vpack.c.b16 %v621, %v615
    %v748 = vpack.c.b16 %v622, %v616
    %v749 = vpack.c.b16 %v629, %v623
    %v750 = vpack.c.b16 %v630, %v624
    %v751 = vpack.c.b16 %v631, %v625
    %v752 = vpack.c.b16 %v632, %v626
    %v753 = vpack.c.b16 %v633, %v627
    %v754 = vpack.c.b16 %v634, %v628
    %v755 = vpack.c.b16 %v641, %v635
    %v756 = vpack.c.b16 %v642, %v636
    %v757 = vpack.c.b16 %v643, %v637
    %v758 = vpack.c.b16 %v644, %v638
    %v759 = vpack.c.b16 %v645, %v639
    %v760 = vpack.c.b16 %v646, %v640
    %v761 = vpack.c.b16 %v653, %v647
    %v762 = vpack.c.b16 %v654, %v648
    %v763 = vpack.c.b16 %v655, %v649
    %v764 = vpack.c.b16 %v656, %v650
    %v765 = vpack.c.b16 %v657, %v651
    %v766 = vpack.c.b16 %v658, %v652
    %v767 = vpack.c.b16 %v665, %v659
    %v768 = vpack.c.b16 %v666, %v660
    %v769 = vpack.c.b16 %v667, %v661
    %v770 = vpack.c.b16 %v668, %v662
    %v771 = vpack.c.b16 %v669, %v663
    %v772 = vpack.c.b16 %v670, %v664
    %v773 = vpack.c.b16 %v677, %v671
    %v774 = vpack.c.b16 %v678, %v672
    %v775 = vpack.c.b16 %v679, %v673
    %v776 = vpack.c.b16 %v680, %v674
    %v777 = vpack.c.b16 %v681, %v675
    %v778 = vpack.c.b16 %v682, %v676
    %875 = vmatprep.subr.bf16.mxu0 %v684
    %876 = vmatpush1.bf16.msra.mxu0 %v683
    %877 = vmatprep.subr.bf16.mxu0 %v690
    %878 = vmatpush1.bf16.msra.mxu0 %v689
    %879 = vmatprep.subr.bf16.mxu0 %v696
    %880 = vmatpush1.bf16.msra.mxu0 %v695
    %881 = vmatprep.subr.bf16.mxu0 %v702
    %882 = vmatpush1.bf16.msra.mxu0 %v701
    %883 = vmatprep.subr.bf16.mxu0 %v708
    %884 = vmatpush1.bf16.msra.mxu0 %v707
    %885 = vmatprep.subr.bf16.mxu0 %v714
    %886 = vmatpush1.bf16.msra.mxu0 %v713
    %887 = vmatprep.subr.bf16.mxu0 %v720
    %888 = vmatpush1.bf16.msra.mxu0 %v719
    %889 = vmatprep.subr.bf16.mxu0 %v726
    %890 = vmatpush1.bf16.msra.mxu0 %v725
    %891 = vmatprep.subr.bf16.mxu0 %v732
    %892 = vmatpush1.bf16.msra.mxu0 %v731
    %893 = vmatprep.subr.bf16.mxu0 %v738
    %894 = vmatpush1.bf16.msra.mxu0 %v737
    %895 = vmatprep.subr.bf16.mxu0 %v744
    %896 = vmatpush1.bf16.msra.mxu0 %v743
    %897 = vmatprep.subr.bf16.mxu0 %v750
    %898 = vmatpush1.bf16.msra.mxu0 %v749
    %899 = vmatprep.subr.bf16.mxu0 %v756
    %900 = vmatpush1.bf16.msra.mxu0 %v755
    %901 = vmatprep.subr.bf16.mxu0 %v762
    %902 = vmatpush1.bf16.msra.mxu0 %v761
    %903 = vmatprep.subr.bf16.mxu0 %v768
    %904 = vmatpush1.bf16.msra.mxu0 %v767
    %905 = vmatprep.subr.bf16.mxu0 %v774
    %906 = vmatpush1.bf16.msra.mxu0 %v773
    %907 = vmatprep.mubr.bf16.mxu0 %v266
    %908 = vmatmul.mubr.bf16.gmra.mrb[0].mxu0 %v265
    %v909 = vpop.f32.mrb[0].mxu0
    %v910 = vadd.f32 %v368, %v909
    %v911 = vpop.f32.mrb[0].mxu0
    %v912 = vadd.f32 %v372, %v911
    %v913 = vpop.f32.mrb[0].mxu0
    %v914 = vpop.f32.mrb[0].mxu0
    %915 = vdwg.mxu0
    %916 = vmatprep.subr.bf16.mxu0 %v686
    %917 = vmatpush1.bf16.msra.mxu0 %v685
    %918 = vmatprep.subr.bf16.mxu0 %v692
    %919 = vmatpush1.bf16.msra.mxu0 %v691
    %920 = vmatprep.subr.bf16.mxu0 %v698
    %921 = vmatpush1.bf16.msra.mxu0 %v697
    %922 = vmatprep.subr.bf16.mxu0 %v704
    %923 = vmatpush1.bf16.msra.mxu0 %v703
    %924 = vmatprep.subr.bf16.mxu0 %v710
    %925 = vmatpush1.bf16.msra.mxu0 %v709
    %926 = vmatprep.subr.bf16.mxu0 %v716
    %927 = vmatpush1.bf16.msra.mxu0 %v715
    %928 = vmatprep.subr.bf16.mxu0 %v722
    %929 = vmatpush1.bf16.msra.mxu0 %v721
    %930 = vmatprep.subr.bf16.mxu0 %v728
    %931 = vmatpush1.bf16.msra.mxu0 %v727
    %932 = vmatprep.subr.bf16.mxu0 %v734
    %933 = vmatpush1.bf16.msra.mxu0 %v733
    %934 = vmatprep.subr.bf16.mxu0 %v740
    %935 = vmatpush1.bf16.msra.mxu0 %v739
    %936 = vmatprep.subr.bf16.mxu0 %v746
    %937 = vmatpush1.bf16.msra.mxu0 %v745
    %938 = vmatprep.subr.bf16.mxu0 %v752
    %939 = vmatpush1.bf16.msra.mxu0 %v751
    %940 = vmatprep.subr.bf16.mxu0 %v758
    %941 = vmatpush1.bf16.msra.mxu0 %v757
    %942 = vmatprep.subr.bf16.mxu0 %v764
    %943 = vmatpush1.bf16.msra.mxu0 %v763
    %944 = vmatprep.subr.bf16.mxu0 %v770
    %945 = vmatpush1.bf16.msra.mxu0 %v769
    %946 = vmatprep.subr.bf16.mxu0 %v776
    %947 = vmatpush1.bf16.msra.mxu0 %v775
    %948 = vmatprep.mubr.bf16.mxu0 %v266
    %949 = vmatmul.mubr.bf16.gmra.mrb[0].mxu0 %v265
    %v950 = vpop.f32.mrb[0].mxu0
    %v951 = vadd.f32 %v376, %v950
    %v952 = vpop.f32.mrb[0].mxu0
    %v953 = vadd.f32 %v380, %v952
    %v954 = vpop.f32.mrb[0].mxu0
    %v955 = vpop.f32.mrb[0].mxu0
    %956 = vdwg.mxu0
    %957 = vmatprep.subr.bf16.mxu0 %v688
    %958 = vmatpush1.bf16.msra.mxu0 %v687
    %959 = vmatprep.subr.bf16.mxu0 %v694
    %960 = vmatpush1.bf16.msra.mxu0 %v693
    %961 = vmatprep.subr.bf16.mxu0 %v700
    %962 = vmatpush1.bf16.msra.mxu0 %v699
    %963 = vmatprep.subr.bf16.mxu0 %v706
    %964 = vmatpush1.bf16.msra.mxu0 %v705
    %965 = vmatprep.subr.bf16.mxu0 %v712
    %966 = vmatpush1.bf16.msra.mxu0 %v711
    %967 = vmatprep.subr.bf16.mxu0 %v718
    %968 = vmatpush1.bf16.msra.mxu0 %v717
    %969 = vmatprep.subr.bf16.mxu0 %v724
    %970 = vmatpush1.bf16.msra.mxu0 %v723
    %971 = vmatprep.subr.bf16.mxu0 %v730
    %972 = vmatpush1.bf16.msra.mxu0 %v729
    %973 = vmatprep.subr.bf16.mxu0 %v736
    %974 = vmatpush1.bf16.msra.mxu0 %v735
    %975 = vmatprep.subr.bf16.mxu0 %v742
    %976 = vmatpush1.bf16.msra.mxu0 %v741
    %977 = vmatprep.subr.bf16.mxu0 %v748
    %978 = vmatpush1.bf16.msra.mxu0 %v747
    %979 = vmatprep.subr.bf16.mxu0 %v754
    %980 = vmatpush1.bf16.msra.mxu0 %v753
    %981 = vmatprep.subr.bf16.mxu0 %v760
    %982 = vmatpush1.bf16.msra.mxu0 %v759
    %983 = vmatprep.subr.bf16.mxu0 %v766
    %984 = vmatpush1.bf16.msra.mxu0 %v765
    %985 = vmatprep.subr.bf16.mxu0 %v772
    %986 = vmatpush1.bf16.msra.mxu0 %v771
    %987 = vmatprep.subr.bf16.mxu0 %v778
    %988 = vmatpush1.bf16.msra.mxu0 %v777
    %989 = vmatprep.mubr.bf16.mxu0 %v266
    %990 = vmatmul.mubr.bf16.gmra.mrb[0].mxu0 %v265
    %v991 = vpop.f32.mrb[0].mxu0
    %v992 = vadd.f32 %v384, %v991
    %v993 = vpop.f32.mrb[0].mxu0
    %v994 = vadd.f32 %v388, %v993
    %v995 = vpop.f32.mrb[0].mxu0
    %v996 = vpop.f32.mrb[0].mxu0
    %997 = vdwg.mxu0
    %v998 = vxor.u32 %v910, 2147483648
    %v999 = vxor.u32 %v912, 2147483648
    %v1000 = vxor.u32 %v951, 2147483648
    %v1001 = vxor.u32 %v953, 2147483648
    %v1002 = vmul.f32 %v998, 1.442695
    %v1003 = vpow.pop %v1002
    %v1004 = vmul.f32 %v999, 1.442695
    %v1005 = vpow.pop %v1004
    %v1006 = vmul.f32 %v1000, 1.442695
    %v1007 = vpow.pop %v1006
    %v1008 = vmul.f32 %v1001, 1.442695
    %v1009 = vpow.pop %v1008
    %v1010 = vadd.f32 %v1003, 1.0
    %v1011 = vadd.f32 %v1005, 1.0
    %v1012 = vadd.f32 %v1007, 1.0
    %v1013 = vadd.f32 %v1009, 1.0
    %v1014 = vrcp.pop %v1010
    %v1015 = vmul.f32 1.0, %v1014
    %v1016 = vrcp.pop %v1011
    %v1017 = vmul.f32 1.0, %v1016
    %v1018 = vrcp.pop %v1012
    %v1019 = vmul.f32 1.0, %v1018
    %v1020 = vrcp.pop %v1013
    %v1021 = vmul.f32 1.0, %v1020
    %v1022 = vtanh.pop %v992
    %v1023 = vtanh.pop %v994
    %v1024 = vmul.f32 %v1015, %v1022
    %v1025 = vmul.f32 %v1017, %v1023
    %v1026 = vtanh.pop %v1024
    %v1027 = vtanh.pop %v1025
    %v1028 = vmul.f32 %v1019, %v1026
    %v1029 = vmul.f32 %v1021, %v1027
    %v1030 = vpack.c.bf16 %v1028, %v1028
    %v1031 = vpack.c.bf16 %v1029, %v1029
    %v1032 = vld [vmem:[#allocation10] sm:$0xff]
    %v1033 = vld [vmem:[#allocation10 + $0x8] sm:$0xff]
    %v1034 = vld [vmem:[#allocation10 + $0x10] sm:$0xff]
    %v1035 = vld [vmem:[#allocation10 + $0x18] sm:$0xff]
    %v1036 = vld [vmem:[#allocation10 + $0x20] sm:$0xff]
    %v1037 = vld [vmem:[#allocation10 + $0x28] sm:$0xff]
    %v1038 = vld [vmem:[#allocation10 + $0x30] sm:$0xff]
    %v1039 = vld [vmem:[#allocation10 + $0x38] sm:$0xff]
    %v1040 = vld [vmem:[#allocation10 + $0x40] sm:$0xff]
    %v1041 = vld [vmem:[#allocation10 + $0x48] sm:$0xff]
    %v1042 = vld [vmem:[#allocation10 + $0x50] sm:$0xff]
    %v1043 = vld [vmem:[#allocation10 + $0x58] sm:$0xff]
    %v1044 = vld [vmem:[#allocation10 + $0x60] sm:$0xff]
    %v1045 = vld [vmem:[#allocation10 + $0x68] sm:$0xff]
    %v1046 = vld [vmem:[#allocation10 + $0x70] sm:$0xff]
    %v1047 = vld [vmem:[#allocation10 + $0x78] sm:$0xff]
    %v1048 = vld [vmem:[#allocation10 + $0x80] sm:$0xff]
    %v1049 = vld [vmem:[#allocation10 + $0x88] sm:$0xff]
    %v1050 = vld [vmem:[#allocation10 + $0x90] sm:$0xff]
    %v1051 = vld [vmem:[#allocation10 + $0x98] sm:$0xff]
    %v1052 = vld [vmem:[#allocation10 + $0xa0] sm:$0xff]
    %v1053 = vld [vmem:[#allocation10 + $0xa8] sm:$0xff]
    %v1054 = vld [vmem:[#allocation10 + $0xb0] sm:$0xff]
    %v1055 = vld [vmem:[#allocation10 + $0xb8] sm:$0xff]
    %v1056 = vld [vmem:[#allocation10 + $0xc0] sm:$0xff]
    %v1057 = vld [vmem:[#allocation10 + $0xc8] sm:$0xff]
    %v1058 = vld [vmem:[#allocation10 + $0xd0] sm:$0xff]
    %v1059 = vld [vmem:[#allocation10 + $0xd8] sm:$0xff]
    %v1060 = vld [vmem:[#allocation10 + $0xe0] sm:$0xff]
    %v1061 = vld [vmem:[#allocation10 + $0xe8] sm:$0xff]
    %v1062 = vld [vmem:[#allocation10 + $0xf0] sm:$0xff]
    %v1063 = vld [vmem:[#allocation10 + $0xf8] sm:$0xff]
    %v1064 = vld [vmem:[#allocation10 + $0x100] sm:$0xff]
    %v1065 = vld [vmem:[#allocation10 + $0x108] sm:$0xff]
    %v1066 = vld [vmem:[#allocation10 + $0x110] sm:$0xff]
    %v1067 = vld [vmem:[#allocation10 + $0x118] sm:$0xff]
    %v1068 = vld [vmem:[#allocation10 + $0x120] sm:$0xff]
    %v1069 = vld [vmem:[#allocation10 + $0x128] sm:$0xff]
    %v1070 = vld [vmem:[#allocation10 + $0x130] sm:$0xff]
    %v1071 = vld [vmem:[#allocation10 + $0x138] sm:$0xff]
    %v1072 = vld [vmem:[#allocation10 + $0x140] sm:$0xff]
    %v1073 = vld [vmem:[#allocation10 + $0x148] sm:$0xff]
    %v1074 = vld [vmem:[#allocation10 + $0x150] sm:$0xff]
    %v1075 = vld [vmem:[#allocation10 + $0x158] sm:$0xff]
    %v1076 = vld [vmem:[#allocation10 + $0x160] sm:$0xff]
    %v1077 = vld [vmem:[#allocation10 + $0x168] sm:$0xff]
    %v1078 = vld [vmem:[#allocation10 + $0x170] sm:$0xff]
    %v1079 = vld [vmem:[#allocation10 + $0x178] sm:$0xff]
    %v1080 = vld [vmem:[#allocation10 + $0x180] sm:$0xff]
    %v1081 = vld [vmem:[#allocation10 + $0x188] sm:$0xff]
    %v1082 = vld [vmem:[#allocation10 + $0x190] sm:$0xff]
    %v1083 = vld [vmem:[#allocation10 + $0x198] sm:$0xff]
    %v1084 = vld [vmem:[#allocation10 + $0x1a0] sm:$0xff]
    %v1085 = vld [vmem:[#allocation10 + $0x1a8] sm:$0xff]
    %v1086 = vld [vmem:[#allocation10 + $0x1b0] sm:$0xff]
    %v1087 = vld [vmem:[#allocation10 + $0x1b8] sm:$0xff]
    %v1088 = vld [vmem:[#allocation10 + $0x1c0] sm:$0xff]
    %v1089 = vld [vmem:[#allocation10 + $0x1c8] sm:$0xff]
    %v1090 = vld [vmem:[#allocation10 + $0x1d0] sm:$0xff]
    %v1091 = vld [vmem:[#allocation10 + $0x1d8] sm:$0xff]
    %v1092 = vld [vmem:[#allocation10 + $0x1e0] sm:$0xff]
    %v1093 = vld [vmem:[#allocation10 + $0x1e8] sm:$0xff]
    %v1094 = vld [vmem:[#allocation10 + $0x1f0] sm:$0xff]
    %v1095 = vld [vmem:[#allocation10 + $0x1f8] sm:$0xff]
    %v1096 = vld [vmem:[#allocation10 + $0x200] sm:$0xff]
    %v1097 = vld [vmem:[#allocation10 + $0x208] sm:$0xff]
    %v1098 = vld [vmem:[#allocation10 + $0x210] sm:$0xff]
    %v1099 = vld [vmem:[#allocation10 + $0x218] sm:$0xff]
    %v1100 = vld [vmem:[#allocation10 + $0x220] sm:$0xff]
    %v1101 = vld [vmem:[#allocation10 + $0x228] sm:$0xff]
    %v1102 = vld [vmem:[#allocation10 + $0x230] sm:$0xff]
    %v1103 = vld [vmem:[#allocation10 + $0x238] sm:$0xff]
    %v1104 = vld [vmem:[#allocation10 + $0x240] sm:$0xff]
    %v1105 = vld [vmem:[#allocation10 + $0x248] sm:$0xff]
    %v1106 = vld [vmem:[#allocation10 + $0x250] sm:$0xff]
    %v1107 = vld [vmem:[#allocation10 + $0x258] sm:$0xff]
    %v1108 = vld [vmem:[#allocation10 + $0x260] sm:$0xff]
    %v1109 = vld [vmem:[#allocation10 + $0x268] sm:$0xff]
    %v1110 = vld [vmem:[#allocation10 + $0x270] sm:$0xff]
    %v1111 = vld [vmem:[#allocation10 + $0x278] sm:$0xff]
    %v1112 = vld [vmem:[#allocation10 + $0x280] sm:$0xff]
    %v1113 = vld [vmem:[#allocation10 + $0x288] sm:$0xff]
    %v1114 = vld [vmem:[#allocation10 + $0x290] sm:$0xff]
    %v1115 = vld [vmem:[#allocation10 + $0x298] sm:$0xff]
    %v1116 = vld [vmem:[#allocation10 + $0x2a0] sm:$0xff]
    %v1117 = vld [vmem:[#allocation10 + $0x2a8] sm:$0xff]
    %v1118 = vld [vmem:[#allocation10 + $0x2b0] sm:$0xff]
    %v1119 = vld [vmem:[#allocation10 + $0x2b8] sm:$0xff]
    %v1120 = vld [vmem:[#allocation10 + $0x2c0] sm:$0xff]
    %v1121 = vld [vmem:[#allocation10 + $0x2c8] sm:$0xff]
    %v1122 = vld [vmem:[#allocation10 + $0x2d0] sm:$0xff]
    %v1123 = vld [vmem:[#allocation10 + $0x2d8] sm:$0xff]
    %v1124 = vld [vmem:[#allocation10 + $0x2e0] sm:$0xff]
    %v1125 = vld [vmem:[#allocation10 + $0x2e8] sm:$0xff]
    %v1126 = vld [vmem:[#allocation10 + $0x2f0] sm:$0xff]
    %v1127 = vld [vmem:[#allocation10 + $0x2f8] sm:$0xff]
    %v1128 = vld [vmem:[%s6] sm:$0x3f]
    %v1130 = vlaneseq
    %v1131 = vshrl.u32 %v1130, 7
    %v1132 = vsub.s32 0, %v1131
    %v1133 = vrot.slane %v1128, %v1132
    %v1134 = vlaneseq
    %v1135 = vshrl.u32 %v1134, 7
    %v1136 = vsub.s32 1, %v1135
    %v1137 = vrot.slane %v1128, %v1136
    %v1138 = vlaneseq
    %v1139 = vshrl.u32 %v1138, 7
    %v1140 = vsub.s32 2, %v1139
    %v1141 = vrot.slane %v1128, %v1140
    %v1142 = vlaneseq
    %v1143 = vshrl.u32 %v1142, 7
    %v1144 = vsub.s32 3, %v1143
    %v1145 = vrot.slane %v1128, %v1144
    %v1146 = vlaneseq
    %v1147 = vshrl.u32 %v1146, 7
    %v1148 = vsub.s32 4, %v1147
    %v1149 = vrot.slane %v1128, %v1148
    %v1150 = vlaneseq
    %v1151 = vshrl.u32 %v1150, 7
    %v1152 = vsub.s32 5, %v1151
    %v1153 = vrot.slane %v1128, %v1152
    %v1256 = vunpack.c.l.b16 %v1032
    %v1257 = vunpack.c.h.b16 %v1032
    %v1258 = vunpack.c.l.b16 %v1033
    %v1259 = vunpack.c.h.b16 %v1033
    %v1260 = vunpack.c.l.b16 %v1034
    %v1261 = vunpack.c.h.b16 %v1034
    %v1262 = vunpack.c.l.b16 %v1035
    %v1263 = vunpack.c.h.b16 %v1035
    %v1264 = vunpack.c.l.b16 %v1036
    %v1265 = vunpack.c.h.b16 %v1036
    %v1266 = vunpack.c.l.b16 %v1037
    %v1267 = vunpack.c.h.b16 %v1037
    %v1268 = vunpack.c.l.b16 %v1038
    %v1269 = vunpack.c.h.b16 %v1038
    %v1270 = vunpack.c.l.b16 %v1039
    %v1271 = vunpack.c.h.b16 %v1039
    %v1272 = vunpack.c.l.b16 %v1040
    %v1273 = vunpack.c.h.b16 %v1040
    %v1274 = vunpack.c.l.b16 %v1041
    %v1275 = vunpack.c.h.b16 %v1041
    %v1276 = vunpack.c.l.b16 %v1042
    %v1277 = vunpack.c.h.b16 %v1042
    %v1278 = vunpack.c.l.b16 %v1043
    %v1279 = vunpack.c.h.b16 %v1043
    %v1280 = vunpack.c.l.b16 %v1044
    %v1281 = vunpack.c.h.b16 %v1044
    %v1282 = vunpack.c.l.b16 %v1045
    %v1283 = vunpack.c.h.b16 %v1045
    %v1284 = vunpack.c.l.b16 %v1046
    %v1285 = vunpack.c.h.b16 %v1046
    %v1286 = vunpack.c.l.b16 %v1047
    %v1287 = vunpack.c.h.b16 %v1047
    %v1288 = vunpack.c.l.b16 %v1048
    %v1289 = vunpack.c.h.b16 %v1048
    %v1290 = vunpack.c.l.b16 %v1049
    %v1291 = vunpack.c.h.b16 %v1049
    %v1292 = vunpack.c.l.b16 %v1050
    %v1293 = vunpack.c.h.b16 %v1050
    %v1294 = vunpack.c.l.b16 %v1051
    %v1295 = vunpack.c.h.b16 %v1051
    %v1296 = vunpack.c.l.b16 %v1052
    %v1297 = vunpack.c.h.b16 %v1052
    %v1298 = vunpack.c.l.b16 %v1053
    %v1299 = vunpack.c.h.b16 %v1053
    %v1300 = vunpack.c.l.b16 %v1054
    %v1301 = vunpack.c.h.b16 %v1054
    %v1302 = vunpack.c.l.b16 %v1055
    %v1303 = vunpack.c.h.b16 %v1055
    %v1304 = vunpack.c.l.b16 %v1056
    %v1305 = vunpack.c.h.b16 %v1056
    %v1306 = vunpack.c.l.b16 %v1057
    %v1307 = vunpack.c.h.b16 %v1057
    %v1308 = vunpack.c.l.b16 %v1058
    %v1309 = vunpack.c.h.b16 %v1058
    %v1310 = vunpack.c.l.b16 %v1059
    %v1311 = vunpack.c.h.b16 %v1059
    %v1312 = vunpack.c.l.b16 %v1060
    %v1313 = vunpack.c.h.b16 %v1060
    %v1314 = vunpack.c.l.b16 %v1061
    %v1315 = vunpack.c.h.b16 %v1061
    %v1316 = vunpack.c.l.b16 %v1062
    %v1317 = vunpack.c.h.b16 %v1062
    %v1318 = vunpack.c.l.b16 %v1063
    %v1319 = vunpack.c.h.b16 %v1063
    %v1320 = vunpack.c.l.b16 %v1064
    %v1321 = vunpack.c.h.b16 %v1064
    %v1322 = vunpack.c.l.b16 %v1065
    %v1323 = vunpack.c.h.b16 %v1065
    %v1324 = vunpack.c.l.b16 %v1066
    %v1325 = vunpack.c.h.b16 %v1066
    %v1326 = vunpack.c.l.b16 %v1067
    %v1327 = vunpack.c.h.b16 %v1067
    %v1328 = vunpack.c.l.b16 %v1068
    %v1329 = vunpack.c.h.b16 %v1068
    %v1330 = vunpack.c.l.b16 %v1069
    %v1331 = vunpack.c.h.b16 %v1069
    %v1332 = vunpack.c.l.b16 %v1070
    %v1333 = vunpack.c.h.b16 %v1070
    %v1334 = vunpack.c.l.b16 %v1071
    %v1335 = vunpack.c.h.b16 %v1071
    %v1336 = vunpack.c.l.b16 %v1072
    %v1337 = vunpack.c.h.b16 %v1072
    %v1338 = vunpack.c.l.b16 %v1073
    %v1339 = vunpack.c.h.b16 %v1073
    %v1340 = vunpack.c.l.b16 %v1074
    %v1341 = vunpack.c.h.b16 %v1074
    %v1342 = vunpack.c.l.b16 %v1075
    %v1343 = vunpack.c.h.b16 %v1075
    %v1344 = vunpack.c.l.b16 %v1076
    %v1345 = vunpack.c.h.b16 %v1076
    %v1346 = vunpack.c.l.b16 %v1077
    %v1347 = vunpack.c.h.b16 %v1077
    %v1348 = vunpack.c.l.b16 %v1078
    %v1349 = vunpack.c.h.b16 %v1078
    %v1350 = vunpack.c.l.b16 %v1079
    %v1351 = vunpack.c.h.b16 %v1079
    %v1352 = vunpack.c.l.b16 %v1080
    %v1353 = vunpack.c.h.b16 %v1080
    %v1354 = vunpack.c.l.b16 %v1081
    %v1355 = vunpack.c.h.b16 %v1081
    %v1356 = vunpack.c.l.b16 %v1082
    %v1357 = vunpack.c.h.b16 %v1082
    %v1358 = vunpack.c.l.b16 %v1083
    %v1359 = vunpack.c.h.b16 %v1083
    %v1360 = vunpack.c.l.b16 %v1084
    %v1361 = vunpack.c.h.b16 %v1084
    %v1362 = vunpack.c.l.b16 %v1085
    %v1363 = vunpack.c.h.b16 %v1085
    %v1364 = vunpack.c.l.b16 %v1086
    %v1365 = vunpack.c.h.b16 %v1086
    %v1366 = vunpack.c.l.b16 %v1087
    %v1367 = vunpack.c.h.b16 %v1087
    %v1368 = vunpack.c.l.b16 %v1088
    %v1369 = vunpack.c.h.b16 %v1088
    %v1370 = vunpack.c.l.b16 %v1089
    %v1371 = vunpack.c.h.b16 %v1089
    %v1372 = vunpack.c.l.b16 %v1090
    %v1373 = vunpack.c.h.b16 %v1090
    %v1374 = vunpack.c.l.b16 %v1091
    %v1375 = vunpack.c.h.b16 %v1091
    %v1376 = vunpack.c.l.b16 %v1092
    %v1377 = vunpack.c.h.b16 %v1092
    %v1378 = vunpack.c.l.b16 %v1093
    %v1379 = vunpack.c.h.b16 %v1093
    %v1380 = vunpack.c.l.b16 %v1094
    %v1381 = vunpack.c.h.b16 %v1094
    %v1382 = vunpack.c.l.b16 %v1095
    %v1383 = vunpack.c.h.b16 %v1095
    %v1384 = vunpack.c.l.b16 %v1096
    %v1385 = vunpack.c.h.b16 %v1096
    %v1386 = vunpack.c.l.b16 %v1097
    %v1387 = vunpack.c.h.b16 %v1097
    %v1388 = vunpack.c.l.b16 %v1098
    %v1389 = vunpack.c.h.b16 %v1098
    %v1390 = vunpack.c.l.b16 %v1099
    %v1391 = vunpack.c.h.b16 %v1099
    %v1392 = vunpack.c.l.b16 %v1100
    %v1393 = vunpack.c.h.b16 %v1100
    %v1394 = vunpack.c.l.b16 %v1101
    %v1395 = vunpack.c.h.b16 %v1101
    %v1396 = vunpack.c.l.b16 %v1102
    %v1397 = vunpack.c.h.b16 %v1102
    %v1398 = vunpack.c.l.b16 %v1103
    %v1399 = vunpack.c.h.b16 %v1103
    %v1400 = vunpack.c.l.b16 %v1104
    %v1401 = vunpack.c.h.b16 %v1104
    %v1402 = vunpack.c.l.b16 %v1105
    %v1403 = vunpack.c.h.b16 %v1105
    %v1404 = vunpack.c.l.b16 %v1106
    %v1405 = vunpack.c.h.b16 %v1106
    %v1406 = vunpack.c.l.b16 %v1107
    %v1407 = vunpack.c.h.b16 %v1107
    %v1408 = vunpack.c.l.b16 %v1108
    %v1409 = vunpack.c.h.b16 %v1108
    %v1410 = vunpack.c.l.b16 %v1109
    %v1411 = vunpack.c.h.b16 %v1109
    %v1412 = vunpack.c.l.b16 %v1110
    %v1413 = vunpack.c.h.b16 %v1110
    %v1414 = vunpack.c.l.b16 %v1111
    %v1415 = vunpack.c.h.b16 %v1111
    %v1416 = vunpack.c.l.b16 %v1112
    %v1417 = vunpack.c.h.b16 %v1112
    %v1418 = vunpack.c.l.b16 %v1113
    %v1419 = vunpack.c.h.b16 %v1113
    %v1420 = vunpack.c.l.b16 %v1114
    %v1421 = vunpack.c.h.b16 %v1114
    %v1422 = vunpack.c.l.b16 %v1115
    %v1423 = vunpack.c.h.b16 %v1115
    %v1424 = vunpack.c.l.b16 %v1116
    %v1425 = vunpack.c.h.b16 %v1116
    %v1426 = vunpack.c.l.b16 %v1117
    %v1427 = vunpack.c.h.b16 %v1117
    %v1428 = vunpack.c.l.b16 %v1118
    %v1429 = vunpack.c.h.b16 %v1118
    %v1430 = vunpack.c.l.b16 %v1119
    %v1431 = vunpack.c.h.b16 %v1119
    %v1432 = vunpack.c.l.b16 %v1120
    %v1433 = vunpack.c.h.b16 %v1120
    %v1434 = vunpack.c.l.b16 %v1121
    %v1435 = vunpack.c.h.b16 %v1121
    %v1436 = vunpack.c.l.b16 %v1122
    %v1437 = vunpack.c.h.b16 %v1122
    %v1438 = vunpack.c.l.b16 %v1123
    %v1439 = vunpack.c.h.b16 %v1123
    %v1440 = vunpack.c.l.b16 %v1124
    %v1441 = vunpack.c.h.b16 %v1124
    %v1442 = vunpack.c.l.b16 %v1125
    %v1443 = vunpack.c.h.b16 %v1125
    %v1444 = vunpack.c.l.b16 %v1126
    %v1445 = vunpack.c.h.b16 %v1126
    %v1446 = vunpack.c.l.b16 %v1127
    %v1447 = vunpack.c.h.b16 %v1127
    %v1448 = vpack.c.b16 %v1262, %v1256
    %v1449 = vpack.c.b16 %v1263, %v1257
    %v1450 = vpack.c.b16 %v1264, %v1258
    %v1451 = vpack.c.b16 %v1265, %v1259
    %v1452 = vpack.c.b16 %v1266, %v1260
    %v1453 = vpack.c.b16 %v1267, %v1261
    %v1454 = vpack.c.b16 %v1274, %v1268
    %v1455 = vpack.c.b16 %v1275, %v1269
    %v1456 = vpack.c.b16 %v1276, %v1270
    %v1457 = vpack.c.b16 %v1277, %v1271
    %v1458 = vpack.c.b16 %v1278, %v1272
    %v1459 = vpack.c.b16 %v1279, %v1273
    %v1460 = vpack.c.b16 %v1286, %v1280
    %v1461 = vpack.c.b16 %v1287, %v1281
    %v1462 = vpack.c.b16 %v1288, %v1282
    %v1463 = vpack.c.b16 %v1289, %v1283
    %v1464 = vpack.c.b16 %v1290, %v1284
    %v1465 = vpack.c.b16 %v1291, %v1285
    %v1466 = vpack.c.b16 %v1298, %v1292
    %v1467 = vpack.c.b16 %v1299, %v1293
    %v1468 = vpack.c.b16 %v1300, %v1294
    %v1469 = vpack.c.b16 %v1301, %v1295
    %v1470 = vpack.c.b16 %v1302, %v1296
    %v1471 = vpack.c.b16 %v1303, %v1297
    %v1472 = vpack.c.b16 %v1310, %v1304
    %v1473 = vpack.c.b16 %v1311, %v1305
    %v1474 = vpack.c.b16 %v1312, %v1306
    %v1475 = vpack.c.b16 %v1313, %v1307
    %v1476 = vpack.c.b16 %v1314, %v1308
    %v1477 = vpack.c.b16 %v1315, %v1309
    %v1478 = vpack.c.b16 %v1322, %v1316
    %v1479 = vpack.c.b16 %v1323, %v1317
    %v1480 = vpack.c.b16 %v1324, %v1318
    %v1481 = vpack.c.b16 %v1325, %v1319
    %v1482 = vpack.c.b16 %v1326, %v1320
    %v1483 = vpack.c.b16 %v1327, %v1321
    %v1484 = vpack.c.b16 %v1334, %v1328
    %v1485 = vpack.c.b16 %v1335, %v1329
    %v1486 = vpack.c.b16 %v1336, %v1330
    %v1487 = vpack.c.b16 %v1337, %v1331
    %v1488 = vpack.c.b16 %v1338, %v1332
    %v1489 = vpack.c.b16 %v1339, %v1333
    %v1490 = vpack.c.b16 %v1346, %v1340
    %v1491 = vpack.c.b16 %v1347, %v1341
    %v1492 = vpack.c.b16 %v1348, %v1342
    %v1493 = vpack.c.b16 %v1349, %v1343
    %v1494 = vpack.c.b16 %v1350, %v1344
    %v1495 = vpack.c.b16 %v1351, %v1345
    %v1496 = vpack.c.b16 %v1358, %v1352
    %v1497 = vpack.c.b16 %v1359, %v1353
    %v1498 = vpack.c.b16 %v1360, %v1354
    %v1499 = vpack.c.b16 %v1361, %v1355
    %v1500 = vpack.c.b16 %v1362, %v1356
    %v1501 = vpack.c.b16 %v1363, %v1357
    %v1502 = vpack.c.b16 %v1370, %v1364
    %v1503 = vpack.c.b16 %v1371, %v1365
    %v1504 = vpack.c.b16 %v1372, %v1366
    %v1505 = vpack.c.b16 %v1373, %v1367
    %v1506 = vpack.c.b16 %v1374, %v1368
    %v1507 = vpack.c.b16 %v1375, %v1369
    %v1508 = vpack.c.b16 %v1382, %v1376
    %v1509 = vpack.c.b16 %v1383, %v1377
    %v1510 = vpack.c.b16 %v1384, %v1378
    %v1511 = vpack.c.b16 %v1385, %v1379
    %v1512 = vpack.c.b16 %v1386, %v1380
    %v1513 = vpack.c.b16 %v1387, %v1381
    %v1514 = vpack.c.b16 %v1394, %v1388
    %v1515 = vpack.c.b16 %v1395, %v1389
    %v1516 = vpack.c.b16 %v1396, %v1390
    %v1517 = vpack.c.b16 %v1397, %v1391
    %v1518 = vpack.c.b16 %v1398, %v1392
    %v1519 = vpack.c.b16 %v1399, %v1393
    %v1520 = vpack.c.b16 %v1406, %v1400
    %v1521 = vpack.c.b16 %v1407, %v1401
    %v1522 = vpack.c.b16 %v1408, %v1402
    %v1523 = vpack.c.b16 %v1409, %v1403
    %v1524 = vpack.c.b16 %v1410, %v1404
    %v1525 = vpack.c.b16 %v1411, %v1405
    %v1526 = vpack.c.b16 %v1418, %v1412
    %v1527 = vpack.c.b16 %v1419, %v1413
    %v1528 = vpack.c.b16 %v1420, %v1414
    %v1529 = vpack.c.b16 %v1421, %v1415
    %v1530 = vpack.c.b16 %v1422, %v1416
    %v1531 = vpack.c.b16 %v1423, %v1417
    %v1532 = vpack.c.b16 %v1430, %v1424
    %v1533 = vpack.c.b16 %v1431, %v1425
    %v1534 = vpack.c.b16 %v1432, %v1426
    %v1535 = vpack.c.b16 %v1433, %v1427
    %v1536 = vpack.c.b16 %v1434, %v1428
    %v1537 = vpack.c.b16 %v1435, %v1429
    %v1538 = vpack.c.b16 %v1442, %v1436
    %v1539 = vpack.c.b16 %v1443, %v1437
    %v1540 = vpack.c.b16 %v1444, %v1438
    %v1541 = vpack.c.b16 %v1445, %v1439
    %v1542 = vpack.c.b16 %v1446, %v1440
    %v1543 = vpack.c.b16 %v1447, %v1441
    %1640 = vmatprep.subr.bf16.mxu0 %v1449
    %1641 = vmatpush1.bf16.msra.mxu0 %v1448
    %1642 = vmatprep.subr.bf16.mxu0 %v1455
    %1643 = vmatpush1.bf16.msra.mxu0 %v1454
    %1644 = vmatprep.subr.bf16.mxu0 %v1461
    %1645 = vmatpush1.bf16.msra.mxu0 %v1460
    %1646 = vmatprep.subr.bf16.mxu0 %v1467
    %1647 = vmatpush1.bf16.msra.mxu0 %v1466
    %1648 = vmatprep.subr.bf16.mxu0 %v1473
    %1649 = vmatpush1.bf16.msra.mxu0 %v1472
    %1650 = vmatprep.subr.bf16.mxu0 %v1479
    %1651 = vmatpush1.bf16.msra.mxu0 %v1478
    %1652 = vmatprep.subr.bf16.mxu0 %v1485
    %1653 = vmatpush1.bf16.msra.mxu0 %v1484
    %1654 = vmatprep.subr.bf16.mxu0 %v1491
    %1655 = vmatpush1.bf16.msra.mxu0 %v1490
    %1656 = vmatprep.subr.bf16.mxu0 %v1497
    %1657 = vmatpush1.bf16.msra.mxu0 %v1496
    %1658 = vmatprep.subr.bf16.mxu0 %v1503
    %1659 = vmatpush1.bf16.msra.mxu0 %v1502
    %1660 = vmatprep.subr.bf16.mxu0 %v1509
    %1661 = vmatpush1.bf16.msra.mxu0 %v1508
    %1662 = vmatprep.subr.bf16.mxu0 %v1515
    %1663 = vmatpush1.bf16.msra.mxu0 %v1514
    %1664 = vmatprep.subr.bf16.mxu0 %v1521
    %1665 = vmatpush1.bf16.msra.mxu0 %v1520
    %1666 = vmatprep.subr.bf16.mxu0 %v1527
    %1667 = vmatpush1.bf16.msra.mxu0 %v1526
    %1668 = vmatprep.subr.bf16.mxu0 %v1533
    %1669 = vmatpush1.bf16.msra.mxu0 %v1532
    %1670 = vmatprep.subr.bf16.mxu0 %v1539
    %1671 = vmatpush1.bf16.msra.mxu0 %v1538
    %1672 = vmatprep.mubr.bf16.mxu0 %v1031
    %1673 = vmatmul.mubr.bf16.gmra.mrb[0].mxu0 %v1030
    %v1674 = vpop.f32.mrb[0].mxu0
    %v1675 = vadd.f32 %v1133, %v1674
    %v1676 = vpop.f32.mrb[0].mxu0
    %v1677 = vadd.f32 %v1137, %v1676
    %v1678 = vpop.f32.mrb[0].mxu0
    %v1679 = vpop.f32.mrb[0].mxu0
    %1680 = vdwg.mxu0
    %1681 = vmatprep.subr.bf16.mxu0 %v1451
    %1682 = vmatpush1.bf16.msra.mxu0 %v1450
    %1683 = vmatprep.subr.bf16.mxu0 %v1457
    %1684 = vmatpush1.bf16.msra.mxu0 %v1456
    %1685 = vmatprep.subr.bf16.mxu0 %v1463
    %1686 = vmatpush1.bf16.msra.mxu0 %v1462
    %1687 = vmatprep.subr.bf16.mxu0 %v1469
    %1688 = vmatpush1.bf16.msra.mxu0 %v1468
    %1689 = vmatprep.subr.bf16.mxu0 %v1475
    %1690 = vmatpush1.bf16.msra.mxu0 %v1474
    %1691 = vmatprep.subr.bf16.mxu0 %v1481
    %1692 = vmatpush1.bf16.msra.mxu0 %v1480
    %1693 = vmatprep.subr.bf16.mxu0 %v1487
    %1694 = vmatpush1.bf16.msra.mxu0 %v1486
    %1695 = vmatprep.subr.bf16.mxu0 %v1493
    %1696 = vmatpush1.bf16.msra.mxu0 %v1492
    %1697 = vmatprep.subr.bf16.mxu0 %v1499
    %1698 = vmatpush1.bf16.msra.mxu0 %v1498
    %1699 = vmatprep.subr.bf16.mxu0 %v1505
    %1700 = vmatpush1.bf16.msra.mxu0 %v1504
    %1701 = vmatprep.subr.bf16.mxu0 %v1511
    %1702 = vmatpush1.bf16.msra.mxu0 %v1510
    %1703 = vmatprep.subr.bf16.mxu0 %v1517
    %1704 = vmatpush1.bf16.msra.mxu0 %v1516
    %1705 = vmatprep.subr.bf16.mxu0 %v1523
    %1706 = vmatpush1.bf16.msra.mxu0 %v1522
    %1707 = vmatprep.subr.bf16.mxu0 %v1529
    %1708 = vmatpush1.bf16.msra.mxu0 %v1528
    %1709 = vmatprep.subr.bf16.mxu0 %v1535
    %1710 = vmatpush1.bf16.msra.mxu0 %v1534
    %1711 = vmatprep.subr.bf16.mxu0 %v1541
    %1712 = vmatpush1.bf16.msra.mxu0 %v1540
    %1713 = vmatprep.mubr.bf16.mxu0 %v1031
    %1714 = vmatmul.mubr.bf16.gmra.mrb[0].mxu0 %v1030
    %v1715 = vpop.f32.mrb[0].mxu0
    %v1716 = vadd.f32 %v1141, %v1715
    %v1717 = vpop.f32.mrb[0].mxu0
    %v1718 = vadd.f32 %v1145, %v1717
    %v1719 = vpop.f32.mrb[0].mxu0
    %v1720 = vpop.f32.mrb[0].mxu0
    %1721 = vdwg.mxu0
    %1722 = vmatprep.subr.bf16.mxu0 %v1453
    %1723 = vmatpush1.bf16.msra.mxu0 %v1452
    %1724 = vmatprep.subr.bf16.mxu0 %v1459
    %1725 = vmatpush1.bf16.msra.mxu0 %v1458
    %1726 = vmatprep.subr.bf16.mxu0 %v1465
    %1727 = vmatpush1.bf16.msra.mxu0 %v1464
    %1728 = vmatprep.subr.bf16.mxu0 %v1471
    %1729 = vmatpush1.bf16.msra.mxu0 %v1470
    %1730 = vmatprep.subr.bf16.mxu0 %v1477
    %1731 = vmatpush1.bf16.msra.mxu0 %v1476
    %1732 = vmatprep.subr.bf16.mxu0 %v1483
    %1733 = vmatpush1.bf16.msra.mxu0 %v1482
    %1734 = vmatprep.subr.bf16.mxu0 %v1489
    %1735 = vmatpush1.bf16.msra.mxu0 %v1488
    %1736 = vmatprep.subr.bf16.mxu0 %v1495
    %1737 = vmatpush1.bf16.msra.mxu0 %v1494
    %1738 = vmatprep.subr.bf16.mxu0 %v1501
    %1739 = vmatpush1.bf16.msra.mxu0 %v1500
    %1740 = vmatprep.subr.bf16.mxu0 %v1507
    %1741 = vmatpush1.bf16.msra.mxu0 %v1506
    %1742 = vmatprep.subr.bf16.mxu0 %v1513
    %1743 = vmatpush1.bf16.msra.mxu0 %v1512
    %1744 = vmatprep.subr.bf16.mxu0 %v1519
    %1745 = vmatpush1.bf16.msra.mxu0 %v1518
    %1746 = vmatprep.subr.bf16.mxu0 %v1525
    %1747 = vmatpush1.bf16.msra.mxu0 %v1524
    %1748 = vmatprep.subr.bf16.mxu0 %v1531
    %1749 = vmatpush1.bf16.msra.mxu0 %v1530
    %1750 = vmatprep.subr.bf16.mxu0 %v1537
    %1751 = vmatpush1.bf16.msra.mxu0 %v1536
    %1752 = vmatprep.subr.bf16.mxu0 %v1543
    %1753 = vmatpush1.bf16.msra.mxu0 %v1542
    %1754 = vmatprep.mubr.bf16.mxu0 %v1031
    %1755 = vmatmul.mubr.bf16.gmra.mrb[0].mxu0 %v1030
    %v1756 = vpop.f32.mrb[0].mxu0
    %v1757 = vadd.f32 %v1149, %v1756
    %v1758 = vpop.f32.mrb[0].mxu0
    %v1759 = vadd.f32 %v1153, %v1758
    %v1760 = vpop.f32.mrb[0].mxu0
    %v1761 = vpop.f32.mrb[0].mxu0
    %1762 = vdwg.mxu0
    %v1763 = vxor.u32 %v1675, 2147483648
    %v1764 = vxor.u32 %v1677, 2147483648
    %v1765 = vxor.u32 %v1716, 2147483648
    %v1766 = vxor.u32 %v1718, 2147483648
    %v1767 = vmul.f32 %v1763, 1.442695
    %v1768 = vpow.pop %v1767
    %v1769 = vmul.f32 %v1764, 1.442695
    %v1770 = vpow.pop %v1769
    %v1771 = vmul.f32 %v1765, 1.442695
    %v1772 = vpow.pop %v1771
    %v1773 = vmul.f32 %v1766, 1.442695
    %v1774 = vpow.pop %v1773
    %v1775 = vadd.f32 %v1768, 1.0
    %v1776 = vadd.f32 %v1770, 1.0
    %v1777 = vadd.f32 %v1772, 1.0
    %v1778 = vadd.f32 %v1774, 1.0
    %v1779 = vrcp.pop %v1775
    %v1780 = vmul.f32 1.0, %v1779
    %v1781 = vrcp.pop %v1776
    %v1782 = vmul.f32 1.0, %v1781
    %v1783 = vrcp.pop %v1777
    %v1784 = vmul.f32 1.0, %v1783
    %v1785 = vrcp.pop %v1778
    %v1786 = vmul.f32 1.0, %v1785
    %v1787 = vtanh.pop %v1757
    %v1788 = vtanh.pop %v1759
    %v1789 = vmul.f32 %v1780, %v1787
    %v1790 = vmul.f32 %v1782, %v1788
    %v1791 = vtanh.pop %v1789
    %v1792 = vtanh.pop %v1790
    %v1793 = vmul.f32 %v1784, %v1791
    %v1794 = vmul.f32 %v1786, %v1792
    %v1795 = vpack.c.bf16 %v1793, %v1793
    %v1796 = vpack.c.bf16 %v1794, %v1794
    %v1797 = vld [vmem:[#allocation11] sm:$0xf]
    %v1798 = vld [vmem:[#allocation11 + $0x4] sm:$0xf]
    %v1799 = vld [vmem:[#allocation11 + $0x8] sm:$0xf]
    %v1800 = vld [vmem:[#allocation11 + $0xc] sm:$0xf]
    %v1801 = vld [vmem:[#allocation11 + $0x10] sm:$0xf]
    %v1802 = vld [vmem:[#allocation11 + $0x14] sm:$0xf]
    %v1803 = vld [vmem:[#allocation11 + $0x18] sm:$0xf]
    %v1804 = vld [vmem:[#allocation11 + $0x1c] sm:$0xf]
    %v1805 = vld [vmem:[#allocation11 + $0x20] sm:$0xf]
    %v1806 = vld [vmem:[#allocation11 + $0x24] sm:$0xf]
    %v1807 = vld [vmem:[#allocation11 + $0x28] sm:$0xf]
    %v1808 = vld [vmem:[#allocation11 + $0x2c] sm:$0xf]
    %v1809 = vld [vmem:[#allocation11 + $0x30] sm:$0xf]
    %v1810 = vld [vmem:[#allocation11 + $0x34] sm:$0xf]
    %v1811 = vld [vmem:[#allocation11 + $0x38] sm:$0xf]
    %v1812 = vld [vmem:[#allocation11 + $0x3c] sm:$0xf]
    %v1813 = vld [vmem:[#allocation11 + $0x40] sm:$0xf]
    %v1814 = vld [vmem:[#allocation11 + $0x44] sm:$0xf]
    %v1815 = vld [vmem:[#allocation11 + $0x48] sm:$0xf]
    %v1816 = vld [vmem:[#allocation11 + $0x4c] sm:$0xf]
    %v1817 = vld [vmem:[#allocation11 + $0x50] sm:$0xf]
    %v1818 = vld [vmem:[#allocation11 + $0x54] sm:$0xf]
    %v1819 = vld [vmem:[#allocation11 + $0x58] sm:$0xf]
    %v1820 = vld [vmem:[#allocation11 + $0x5c] sm:$0xf]
    %v1821 = vld [vmem:[#allocation11 + $0x60] sm:$0xf]
    %v1822 = vld [vmem:[#allocation11 + $0x64] sm:$0xf]
    %v1823 = vld [vmem:[#allocation11 + $0x68] sm:$0xf]
    %v1824 = vld [vmem:[#allocation11 + $0x6c] sm:$0xf]
    %v1825 = vld [vmem:[#allocation11 + $0x70] sm:$0xf]
    %v1826 = vld [vmem:[#allocation11 + $0x74] sm:$0xf]
    %v1827 = vld [vmem:[#allocation11 + $0x78] sm:$0xf]
    %v1828 = vld [vmem:[#allocation11 + $0x7c] sm:$0xf]
    %v1829 = vld [vmem:[%s8] sm:$0x1]
    %v1831 = vlaneseq
    %v1832 = vshrl.u32 %v1831, 7
    %v1833 = vsub.s32 0, %v1832
    %v1834 = vrot.slane %v1829, %v1833
    %v1868 = vunpack.c.l.b16 %v1797
    %v1869 = vunpack.c.l.b16 %v1798
    %v1870 = vunpack.c.l.b16 %v1799
    %v1871 = vunpack.c.l.b16 %v1800
    %v1872 = vunpack.c.l.b16 %v1801
    %v1873 = vunpack.c.l.b16 %v1802
    %v1874 = vunpack.c.l.b16 %v1803
    %v1875 = vunpack.c.l.b16 %v1804
    %v1876 = vunpack.c.l.b16 %v1805
    %v1877 = vunpack.c.l.b16 %v1806
    %v1878 = vunpack.c.l.b16 %v1807
    %v1879 = vunpack.c.l.b16 %v1808
    %v1880 = vunpack.c.l.b16 %v1809
    %v1881 = vunpack.c.l.b16 %v1810
    %v1882 = vunpack.c.l.b16 %v1811
    %v1883 = vunpack.c.l.b16 %v1812
    %v1884 = vunpack.c.l.b16 %v1813
    %v1885 = vunpack.c.l.b16 %v1814
    %v1886 = vunpack.c.l.b16 %v1815
    %v1887 = vunpack.c.l.b16 %v1816
    %v1888 = vunpack.c.l.b16 %v1817
    %v1889 = vunpack.c.l.b16 %v1818
    %v1890 = vunpack.c.l.b16 %v1819
    %v1891 = vunpack.c.l.b16 %v1820
    %v1892 = vunpack.c.l.b16 %v1821
    %v1893 = vunpack.c.l.b16 %v1822
    %v1894 = vunpack.c.l.b16 %v1823
    %v1895 = vunpack.c.l.b16 %v1824
    %v1896 = vunpack.c.l.b16 %v1825
    %v1897 = vunpack.c.l.b16 %v1826
    %v1898 = vunpack.c.l.b16 %v1827
    %v1899 = vunpack.c.l.b16 %v1828
    %v1900 = vpack.c.b16 %v1869, %v1868
    %v1901 = vpack.c.b16 %v1871, %v1870
    %v1902 = vpack.c.b16 %v1873, %v1872
    %v1903 = vpack.c.b16 %v1875, %v1874
    %v1904 = vpack.c.b16 %v1877, %v1876
    %v1905 = vpack.c.b16 %v1879, %v1878
    %v1906 = vpack.c.b16 %v1881, %v1880
    %v1907 = vpack.c.b16 %v1883, %v1882
    %v1908 = vpack.c.b16 %v1885, %v1884
    %v1909 = vpack.c.b16 %v1887, %v1886
    %v1910 = vpack.c.b16 %v1889, %v1888
    %v1911 = vpack.c.b16 %v1891, %v1890
    %v1912 = vpack.c.b16 %v1893, %v1892
    %v1913 = vpack.c.b16 %v1895, %v1894
    %v1914 = vpack.c.b16 %v1897, %v1896
    %v1915 = vpack.c.b16 %v1899, %v1898
    %1932 = vmatprep.subr.bf16.mxu0 0
    %1933 = vmatpush1.bf16.msra.mxu0 %v1900
    %1934 = vmatprep.subr.bf16.mxu0 0
    %1935 = vmatpush1.bf16.msra.mxu0 %v1901
    %1936 = vmatprep.subr.bf16.mxu0 0
    %1937 = vmatpush1.bf16.msra.mxu0 %v1902
    %1938 = vmatprep.subr.bf16.mxu0 0
    %1939 = vmatpush1.bf16.msra.mxu0 %v1903
    %1940 = vmatprep.subr.bf16.mxu0 0
    %1941 = vmatpush1.bf16.msra.mxu0 %v1904
    %1942 = vmatprep.subr.bf16.mxu0 0
    %1943 = vmatpush1.bf16.msra.mxu0 %v1905
    %1944 = vmatprep.subr.bf16.mxu0 0
    %1945 = vmatpush1.bf16.msra.mxu0 %v1906
    %1946 = vmatprep.subr.bf16.mxu0 0
    %1947 = vmatpush1.bf16.msra.mxu0 %v1907
    %1948 = vmatprep.subr.bf16.mxu0 0
    %1949 = vmatpush1.bf16.msra.mxu0 %v1908
    %1950 = vmatprep.subr.bf16.mxu0 0
    %1951 = vmatpush1.bf16.msra.mxu0 %v1909
    %1952 = vmatprep.subr.bf16.mxu0 0
    %1953 = vmatpush1.bf16.msra.mxu0 %v1910
    %1954 = vmatprep.subr.bf16.mxu0 0
    %1955 = vmatpush1.bf16.msra.mxu0 %v1911
    %1956 = vmatprep.subr.bf16.mxu0 0
    %1957 = vmatpush1.bf16.msra.mxu0 %v1912
    %1958 = vmatprep.subr.bf16.mxu0 0
    %1959 = vmatpush1.bf16.msra.mxu0 %v1913
    %1960 = vmatprep.subr.bf16.mxu0 0
    %1961 = vmatpush1.bf16.msra.mxu0 %v1914
    %1962 = vmatprep.subr.bf16.mxu0 0
    %1963 = vmatpush1.bf16.msra.mxu0 %v1915
    %1964 = vmatprep.mubr.bf16.mxu0 %v1796
    %1965 = vmatmul.mubr.bf16.gmra.mrb[0].mxu0 %v1795
    %v1966 = vpop.f32.mrb[0].mxu0
    %v1967 = vadd.f32 %v1834, %v1966
    %v1968 = vpop.f32.mrb[0].mxu0
    %v1969 = vpop.f32.mrb[0].mxu0
    %v1970 = vpop.f32.mrb[0].mxu0
    %1971 = vdwg.mxu0
    %v1972 = vtanh.pop %v1967
    %1973 = vst [vmem:[#allocation13] sm:$0xff] %v1972
    // Predicated region
    $region62: #{_net_forward_padded.1} parent=1 // pred_check
      _
    $region63: #{_net_forward_padded.1} parent=1 // pred_check_branch
      %1975 = sbr.rel (0) target = $region65
    $region64: #{_net_forward_padded.1} parent=1 // pred_region
      %s1977 = ssub.s32 128, 128
      %1978 = vsyncadd [#allocation4], %s1977
      %s1980 = sshll.u32 [#allocation13], 4
      %s1981 = int_to_ptr.vmem [resolvable:$true] %s1980
      %1983 = dma.vmem_to_hbm [thread:$0]  %s1981, 128, %s9, [#allocation4]
    $region65: #{_net_forward_padded.1} parent=1 // pred_fallthru
      _
    // Predicated region
    $region66: #{_net_forward_padded.1} parent=1 // pred_check
      _
    $region67: #{_net_forward_padded.1} parent=1 // pred_check_branch
      %1985 = sbr.rel (0) target = $region69
    $region68: #{_net_forward_padded.1} parent=1 // pred_region
      %1986 = dma.done [#allocation4], 128
    $region69: #{_net_forward_padded.1} parent=1 // pred_fallthru
      _
    %1987 = vsyncpa [#allocation3], 1
    %1988 = vsyncpa [#allocation6], 1
    %1989 = vsyncpa [#allocation9], 1
    %1990 = vsyncpa [#allocation12], 1
    %1991 = vsyncpa [#allocation4], 1

</llo_original>
